<compile_context>
chip_gen: v7x
topology: tpu7x:2x2x1
jax: 0.10.0
libtpu: 0.0.40
codegen_flags: <defaults>
</compile_context>

<pallas_src>
import functools

import jax
import jax.numpy as jnp
from jax.experimental import pallas as pl
from jax.experimental.pallas import tpu as pltpu


# ----------------------------------------------------------------------------
# Parameter slab layout (one (rows, 4H) f32 array, every block 8-row aligned).
# ----------------------------------------------------------------------------
def _round_up(x, m):
    return ((x + m - 1) // m) * m


def _layout(input_dim, action_dim, hidden_dim, num_layers):
    """Row offsets of each parameter block inside the packed slab."""
    lay = {}
    off = 0

    def add(name, rows):
        nonlocal off
        lay[name] = off
        off += _round_up(rows, 8)

    add("encg", input_dim)       # wenc_t @ wih0[A:, :]            (D_in, 4H)
    add("wih0a", action_dim)     # wih0[:A, :]                     (A, 4H)
    add("b0", 1)                 # b0 + benc @ wih0[A:, :]         (1, 4H)
    add("whh0", hidden_dim)      # whh0                            (H, 4H)
    for l in range(1, num_layers):
        add(f"wih{l}", hidden_dim)
        add(f"whh{l}", hidden_dim)
        add(f"b{l}", 1)
    add("wout", hidden_dim)      # wout_t lane-padded to 128       (H, 4H)
    add("bout", 1)               # bout lane-padded to 128         (1, 4H)
    return lay, off


def pack_params(params, *, input_dim, action_dim, hidden_dim, num_layers):
    """One-time preprocessing: fold the encoder into layer-0 gates and pack
    every weight into a single 128-lane-dense f32 slab (one DMA)."""
    D_in, A, H, L = input_dim, action_dim, hidden_dim, num_layers
    G = 4 * H
    # TODO(synk): generalize lane padding for 4*H not a multiple of 128.
    assert G % 128 == 0 and D_in <= G

    lay, total_rows = _layout(D_in, A, H, L)
    slab = jnp.zeros((total_rows, G), jnp.float32)

    wih0 = params["wih0_t"]                       # (A + H, 4H)
    wih0_a, wih0_h = wih0[:A], wih0[A:]
    w_enc_g = params["wenc_t"] @ wih0_h           # (D_in, 4H)
    b0_eff = params["b0"] + params["benc"] @ wih0_h   # (1, 4H)

    slab = slab.at[lay["encg"]:lay["encg"] + D_in, :].set(w_enc_g)
    slab = slab.at[lay["wih0a"]:lay["wih0a"] + A, :].set(wih0_a)
    slab = slab.at[lay["b0"]:lay["b0"] + 1, :].set(b0_eff)
    slab = slab.at[lay["whh0"]:lay["whh0"] + H, :].set(params["whh0_t"])
    for l in range(1, L):
        slab = slab.at[lay[f"wih{l}"]:lay[f"wih{l}"] + H, :].set(params[f"wih{l}_t"])
        slab = slab.at[lay[f"whh{l}"]:lay[f"whh{l}"] + H, :].set(params[f"whh{l}_t"])
        slab = slab.at[lay[f"b{l}"]:lay[f"b{l}"] + 1, :].set(params[f"b{l}"])

    wout_pad = jnp.zeros((H, G), jnp.float32).at[:, :D_in].set(params["wout_t"])
    bout_pad = jnp.zeros((1, G), jnp.float32).at[:, :D_in].set(params["bout"])
    slab = slab.at[lay["wout"]:lay["wout"] + H, :].set(wout_pad)
    slab = slab.at[lay["bout"]:lay["bout"] + 1, :].set(bout_pad)
    return slab


# ----------------------------------------------------------------------------
# Fused forward kernel (whole model, one grid step per independent problem).
# ----------------------------------------------------------------------------
def _make_kernel(B, T, A, D_in, H, L, lay, DP):
    G = 4 * H

    def kernel(act_ref, init_ref, p_ref, out_ref, seq_ref):
        # Lane-constant pre/post scales: one full-width tanh per cell yields
        # sigmoid on the i/f/o gate lanes and tanh on the g lanes:
        #   act = pre * tanh(pre * gates) + bpost
        lane = jax.lax.broadcasted_iota(jnp.int32, (1, G), 1)
        is_g = jnp.logical_and(lane >= 2 * H, lane < 3 * H)
        pre = jnp.where(is_g, 1.0, 0.5).astype(jnp.float32)      # (1, 4H)
        bpost = jnp.where(is_g, 0.0, 0.5).astype(jnp.float32)    # (1, 4H)

        # Layer-0 per-step gate bias: folded state encoder + combined bias.
        w_enc_g = p_ref[lay["encg"]:lay["encg"] + D_in, :]
        b0_eff = p_ref[lay["b0"]:lay["b0"] + 1, :]
        enc_bias = jnp.dot(init_ref[...], w_enc_g,
                           preferred_element_type=jnp.float32) + b0_eff      # (B, 4H)

        # Layer-0 input projection for ALL steps in one MXU push, then fold
        # the per-step encoder bias in once, off the serial dependency chain.
        wih0_a = p_ref[lay["wih0a"]:lay["wih0a"] + A, :]
        xg = jnp.dot(act_ref[...], wih0_a,
                     preferred_element_type=jnp.float32)                      # (B*T, 4H)
        xg = (xg.reshape(B, T, G) + enc_bias[:, None, :]).reshape(B * T, G)

        for l in range(L):
            whh = p_ref[lay[f"whh{l}"]:lay[f"whh{l}"] + H, :]                 # (H, 4H)
            if l > 0:
                wih = p_ref[lay[f"wih{l}"]:lay[f"wih{l}"] + H, :]
                bl = p_ref[lay[f"b{l}"]:lay[f"b{l}"] + 1, :]
                # Input projection + bias hoisted out of the recurrence.
                xg = jnp.dot(seq_ref[...], wih,
                             preferred_element_type=jnp.float32) + bl         # (B*T, 4H)

            h = jnp.zeros((T, H), jnp.float32)
            c = jnp.zeros((T, H), jnp.float32)
            for i in range(B):  # serial recurrence (PyTorch "time" axis); B tiny
                g = xg[i * T:(i + 1) * T, :] + jnp.dot(
                    h, whh, preferred_element_type=jnp.float32)               # (T, 4H)
                ga = pre * jnp.tanh(g * pre) + bpost  # one EUP push, 4 gates
                i_g = ga[:, 0 * H:1 * H]
                f_g = ga[:, 1 * H:2 * H]
                g_g = ga[:, 2 * H:3 * H]
                o_g = ga[:, 3 * H:4 * H]
                c = f_g * c + i_g * g_g
                h = o_g * jnp.tanh(c)
                seq_ref[i * T:(i + 1) * T, :] = h   # sublane-aligned store (T=8)

        # Batched, lane-dense output head: one matmul, one unmasked store.
        wout = p_ref[lay["wout"]:lay["wout"] + H, :DP]
        bout = p_ref[lay["bout"]:lay["bout"] + 1, :DP]
        out_ref[...] = jnp.dot(seq_ref[...], wout,
                               preferred_element_type=jnp.float32) + bout     # (B*T, DP)

    return kernel


def seq2seq_forward_batched(initial_states, action_sequences, packed_params, *,
                            hidden_dim, num_layers):
    """N independent problems: initial_states (N,B,D_in), actions (N,B,T,A)."""
    N, B, D_in = initial_states.shape
    Nn, Bb, T, A = action_sequences.shape
    assert Nn == N and Bb == B
    H, L = hidden_dim, num_layers
    G = 4 * H
    DP = _round_up(D_in, 128)
    assert G % 128 == 0 and D_in <= G and DP <= G

    lay, total_rows = _layout(D_in, A, H, L)

    act = action_sequences.reshape(N, B * T, A).astype(jnp.float32)
    init = initial_states.astype(jnp.float32)

    # Advisory cost estimate (per problem x N) for XLA's scheduler.
    flops_per = (2 * B * D_in * G                 # encoder fold matmul
                 + 2 * (B * T) * A * G            # layer-0 input projection
                 + (L - 1) * 2 * (B * T) * H * G  # layer>0 input projections
                 + L * B * 2 * T * H * G          # serial h @ whh
                 + 2 * (B * T) * H * DP)          # output head
    transc_per = L * B * (T * G + T * H)          # gate tanh + tanh(c)
    bytes_accessed = 4 * (N * (B * T * A + B * D_in + B * T * DP)
                          + total_rows * G)

    out_flat = pl.pallas_call(
        _make_kernel(B, T, A, D_in, H, L, lay, DP),
        out_shape=jax.ShapeDtypeStruct((N, B * T, DP), jnp.float32),
        grid=(N,),
        in_specs=[
            pl.BlockSpec((None, B * T, A), lambda n: (n, 0, 0)),
            pl.BlockSpec((None, B, D_in), lambda n: (n, 0, 0)),
            # Constant block index -> param slab stays VMEM-resident across grid.
            pl.BlockSpec((total_rows, G), lambda n: (0, 0)),
        ],
        out_specs=pl.BlockSpec((None, B * T, DP), lambda n: (n, 0, 0)),
        scratch_shapes=[pltpu.VMEM((B * T, H), jnp.float32)],
        compiler_params=pltpu.CompilerParams(
            dimension_semantics=("parallel",)),
        cost_estimate=pl.CostEstimate(
            flops=N * flops_per,
            transcendentals=N * transc_per,
            bytes_accessed=bytes_accessed),
    )(act, init, packed_params)

    # Lane-dense (N, B*T, 128) kernel output -> (N, B, T, D_in) model output.
    return out_flat[:, :, :D_in].reshape(N, B, T, D_in)


def seq2seq_forward(initial_state, action_sequence, packed_params, *,
                    hidden_dim, num_layers):
    """Single-problem convenience wrapper (matches the PyTorch forward)."""
    out = seq2seq_forward_batched(initial_state[None], action_sequence[None],
                                  packed_params, hidden_dim=hidden_dim,
                                  num_layers=num_layers)
    return out[0]


# ----------------------------------------------------------------------------
# Pure-JAX reference mirroring the PyTorch semantics (for validation).
# ----------------------------------------------------------------------------
def _reference_forward(initial_state, action_sequence, params, *, hidden_dim, num_layers):
    B, D_in = initial_state.shape
    _, T, A = action_sequence.shape
    H, L = hidden_dim, num_layers
    encoded = initial_state @ params["wenc_t"] + params["benc"]  # (B, H)
    seq = [jnp.concatenate(
        [action_sequence[i], jnp.broadcast_to(encoded[i:i + 1], (T, H))], axis=1)
        for i in range(B)]
    for l in range(L):
        wih, whh, b = params[f"wih{l}_t"], params[f"whh{l}_t"], params[f"b{l}"]
        h = jnp.zeros((T, H), jnp.float32)
        c = jnp.zeros((T, H), jnp.float32)
        new_seq = []
        for i in range(B):
            gates = seq[i] @ wih + h @ whh + b
            i_g = jax.nn.sigmoid(gates[:, 0 * H:1 * H])
            f_g = jax.nn.sigmoid(gates[:, 1 * H:2 * H])
            g_g = jnp.tanh(gates[:, 2 * H:3 * H])
            o_g = jax.nn.sigmoid(gates[:, 3 * H:4 * H])
            c = f_g * c + i_g * g_g
            h = o_g * jnp.tanh(c)
            new_seq.append(h)
        seq = new_seq
    return jnp.stack([seq[i] @ params["wout_t"] + params["bout"] for i in range(B)], axis=0)


def init_params(key, input_dim, action_dim, hidden_dim, num_layers):
    """Deterministic synthetic parameters (shapes match the PyTorch module)."""
    params = {}
    keys = jax.random.split(key, 4 + 4 * num_layers)
    k = iter(keys)
    scale = 0.1
    # state_encoder: Linear(input_dim, hidden_dim), stored transposed.
    params["wenc_t"] = scale * jax.random.normal(next(k), (input_dim, hidden_dim), jnp.float32)
    params["benc"] = scale * jax.random.normal(next(k), (1, hidden_dim), jnp.float32)
    # LSTM(action_dim + hidden_dim, hidden_dim, num_layers)
    in_size = action_dim + hidden_dim
    for l in range(num_layers):
        params[f"wih{l}_t"] = scale * jax.random.normal(next(k), (in_size, 4 * hidden_dim), jnp.float32)
        params[f"whh{l}_t"] = scale * jax.random.normal(next(k), (hidden_dim, 4 * hidden_dim), jnp.float32)
        # combined bias = b_ih + b_hh
        params[f"b{l}"] = scale * jax.random.normal(next(k), (1, 4 * hidden_dim), jnp.float32)
        in_size = hidden_dim
    # output_layer: Linear(hidden_dim, input_dim), stored transposed.
    params["wout_t"] = scale * jax.random.normal(next(k), (hidden_dim, input_dim), jnp.float32)
    params["bout"] = scale * jax.random.normal(next(k), (1, input_dim), jnp.float32)
    return params


if __name__ == "__main__":
    # Small, module-consistent shapes.
    B, T = 4, 8              # batch, sequence length
    INPUT_DIM = 16           # state dimension
    ACTION_DIM = 8           # action dimension
    HIDDEN_DIM = 32          # config['model']['hidden_size']
    NUM_LAYERS = 2           # config['model']['num_layers']

    key = jax.random.PRNGKey(0)
    k_state, k_act, k_param = jax.random.split(key, 3)
    initial_state = jax.random.normal(k_state, (B, INPUT_DIM), jnp.float32)
    action_sequence = jax.random.normal(k_act, (B, T, ACTION_DIM), jnp.float32)
    params = init_params(k_param, INPUT_DIM, ACTION_DIM, HIDDEN_DIM, NUM_LAYERS)

    # One-time parameter fold + pack (not on the hot path).
    packed = pack_params(params, input_dim=INPUT_DIM, action_dim=ACTION_DIM,
                         hidden_dim=HIDDEN_DIM, num_layers=NUM_LAYERS)

    # Single-problem path (matches the PyTorch module forward).
    fwd = jax.jit(functools.partial(seq2seq_forward,
                                    hidden_dim=HIDDEN_DIM, num_layers=NUM_LAYERS))
    preds = jax.block_until_ready(fwd(initial_state, action_sequence, packed))

    ref = _reference_forward(initial_state, action_sequence, params,
                             hidden_dim=HIDDEN_DIM, num_layers=NUM_LAYERS)
    assert preds.shape == (B, T, INPUT_DIM)
    max_err = float(jnp.max(jnp.abs(preds - ref)))
    assert jnp.allclose(preds, ref, rtol=1e-4, atol=1e-4), max_err

    # Batched path: N independent problems amortized through a single
    # pallas_call grid (params stay VMEM-resident; "parallel" axis for v7x).
    N = 3
    k_s2, k_a2 = jax.random.split(jax.random.PRNGKey(1))
    states_n = jax.random.normal(k_s2, (N, B, INPUT_DIM), jnp.float32)
    acts_n = jax.random.normal(k_a2, (N, B, T, ACTION_DIM), jnp.float32)
    fwd_n = jax.jit(functools.partial(seq2seq_forward_batched,
                                      hidden_dim=HIDDEN_DIM, num_layers=NUM_LAYERS))
    preds_n = jax.block_until_ready(fwd_n(states_n, acts_n, packed))
    assert preds_n.shape == (N, B, T, INPUT_DIM)
    for n in range(N):
        ref_n = _reference_forward(states_n[n], acts_n[n], params,
                                   hidden_dim=HIDDEN_DIM, num_layers=NUM_LAYERS)
        err_n = float(jnp.max(jnp.abs(preds_n[n] - ref_n)))
        assert jnp.allclose(preds_n[n], ref_n, rtol=1e-4, atol=1e-4), (n, err_n)

    print("KERNEL_OK")
</pallas_src>

<mosaic_0001>
module attributes {stable_mosaic.version = 11 : i64} {
  func.func @kernel(%arg0: i32, %arg1: memref<1x32x8xf32, #tpu.memory_space<vmem>>, %arg2: memref<1x4x16xf32, #tpu.memory_space<vmem>>, %arg3: memref<176x128xf32, #tpu.memory_space<vmem>>, %arg4: memref<1x32x128xf32, #tpu.memory_space<vmem>>, %arg5: memref<32x32xf32, #tpu.memory_space<vmem>>) attributes {dimension_semantics = [#tpu.dimension_semantics<parallel>], iteration_bounds = array<i64: 1>, scalar_prefetch = 0 : i64, scratch_operands = 1 : i64, tpu.core_type = #tpu.core_type<tc>, window_params = [{transform_indices = @transform_0, window_bounds = array<i64: 1, 32, 8>}, {transform_indices = @transform_1, window_bounds = array<i64: 1, 4, 16>}, {pipeline_mode = #tpu.pipeline_mode<synchronous>, transform_indices = @transform_2, window_bounds = array<i64: 176, 128>}, {transform_indices = @transform_3, window_bounds = array<i64: 1, 32, 128>}]} {
    %0 = tpu.iota {dimensions = array<i32: 1>} : vector<1x128xi32>
    %c64_i32 = arith.constant 64 : i32
    %1 = vector.broadcast %c64_i32 : i32 to vector<1x128xi32>
    %2 = arith.cmpi sge, %0, %1 : vector<1x128xi32>
    %c96_i32 = arith.constant 96 : i32
    %3 = vector.broadcast %c96_i32 : i32 to vector<1x128xi32>
    %4 = arith.cmpi slt, %0, %3 : vector<1x128xi32>
    %5 = arith.andi %2, %4 : vector<1x128xi1>
    %cst = arith.constant 1.000000e+00 : f32
    %cst_0 = arith.constant 5.000000e-01 : f32
    %6 = vector.broadcast %cst : f32 to vector<1x128xf32>
    %7 = vector.broadcast %cst_0 : f32 to vector<1x128xf32>
    %8 = arith.select %5, %6, %7 : vector<1x128xi1>, vector<1x128xf32>
    %cst_1 = arith.constant 0.000000e+00 : f32
    %cst_2 = arith.constant 5.000000e-01 : f32
    %9 = vector.broadcast %cst_1 : f32 to vector<1x128xf32>
    %10 = vector.broadcast %cst_2 : f32 to vector<1x128xf32>
    %11 = arith.select %5, %9, %10 : vector<1x128xi1>, vector<1x128xf32>
    %c0 = arith.constant 0 : index
    %c0_3 = arith.constant 0 : index
    %12 = vector.load %arg3[%c0, %c0_3] : memref<176x128xf32, #tpu.memory_space<vmem>>, vector<16x128xf32>
    %c24 = arith.constant 24 : index
    %c0_4 = arith.constant 0 : index
    %13 = vector.load %arg3[%c24, %c0_4] : memref<176x128xf32, #tpu.memory_space<vmem>>, vector<1x128xf32>
    %c0_5 = arith.constant 0 : index
    %c0_6 = arith.constant 0 : index
    %c0_7 = arith.constant 0 : index
    %14 = vector.load %arg2[%c0_5, %c0_6, %c0_7] : memref<1x4x16xf32, #tpu.memory_space<vmem>>, vector<1x4x16xf32>
    %15 = vector.shape_cast %14 : vector<1x4x16xf32> to vector<4x16xf32>
    %cst_8 = arith.constant dense<0.000000e+00> : vector<4x128xf32>
    %16 = tpu.matmul %15, %12, %cst_8 {dimension_numbers = #tpu.dot_dimension_numbers<[1], [0], [0], [1], [0, 0, 1, 1], [], []>} : vector<4x16xf32>, vector<16x128xf32>, vector<4x128xf32> -> vector<4x128xf32>
    %17 = vector.broadcast %13 : vector<1x128xf32> to vector<4x128xf32>
    %18 = arith.addf %16, %17 : vector<4x128xf32>
    %c16 = arith.constant 16 : index
    %c0_9 = arith.constant 0 : index
    %19 = vector.load %arg3[%c16, %c0_9] : memref<176x128xf32, #tpu.memory_space<vmem>>, vector<8x128xf32>
    %c0_10 = arith.constant 0 : index
    %c0_11 = arith.constant 0 : index
    %c0_12 = arith.constant 0 : index
    %20 = vector.load %arg1[%c0_10, %c0_11, %c0_12] : memref<1x32x8xf32, #tpu.memory_space<vmem>>, vector<1x32x8xf32>
    %21 = vector.shape_cast %20 : vector<1x32x8xf32> to vector<32x8xf32>
    %cst_13 = arith.constant dense<0.000000e+00> : vector<32x128xf32>
    %22 = tpu.matmul %21, %19, %cst_13 {dimension_numbers = #tpu.dot_dimension_numbers<[1], [0], [0], [1], [0, 0, 1, 1], [], []>} : vector<32x8xf32>, vector<8x128xf32>, vector<32x128xf32> -> vector<32x128xf32>
    %23 = vector.shape_cast %22 : vector<32x128xf32> to vector<4x8x128xf32>
    %24 = vector.shape_cast %18 : vector<4x128xf32> to vector<4x1x128xf32>
    %25 = vector.broadcast %24 : vector<4x1x128xf32> to vector<4x8x128xf32>
    %26 = arith.addf %23, %25 : vector<4x8x128xf32>
    %27 = vector.shape_cast %26 : vector<4x8x128xf32> to vector<32x128xf32>
    %c32 = arith.constant 32 : index
    %c0_14 = arith.constant 0 : index
    %28 = vector.load %arg3[%c32, %c0_14] : memref<176x128xf32, #tpu.memory_space<vmem>>, vector<32x128xf32>
    %cst_15 = arith.constant 0.000000e+00 : f32
    %29 = vector.broadcast %cst_15 : f32 to vector<8x32xf32>
    %cst_16 = arith.constant 0.000000e+00 : f32
    %30 = vector.broadcast %cst_16 : f32 to vector<8x32xf32>
    %31 = vector.extract_strided_slice %27 {offsets = [0, 0], sizes = [8, 128], strides = [1, 1]} : vector<32x128xf32> to vector<8x128xf32>
    %cst_17 = arith.constant dense<0.000000e+00> : vector<8x128xf32>
    %32 = tpu.matmul %29, %28, %cst_17 {dimension_numbers = #tpu.dot_dimension_numbers<[1], [0], [0], [1], [0, 0, 1, 1], [], []>} : vector<8x32xf32>, vector<32x128xf32>, vector<8x128xf32> -> vector<8x128xf32>
    %33 = arith.addf %31, %32 : vector<8x128xf32>
    %34 = vector.broadcast %8 : vector<1x128xf32> to vector<8x128xf32>
    %35 = arith.mulf %33, %34 : vector<8x128xf32>
    %36 = math.tanh %35 : vector<8x128xf32>
    %37 = vector.broadcast %8 : vector<1x128xf32> to vector<8x128xf32>
    %38 = arith.mulf %37, %36 : vector<8x128xf32>
    %39 = vector.broadcast %11 : vector<1x128xf32> to vector<8x128xf32>
    %40 = arith.addf %38, %39 : vector<8x128xf32>
    %41 = vector.extract_strided_slice %40 {offsets = [0, 0], sizes = [8, 32], strides = [1, 1]} : vector<8x128xf32> to vector<8x32xf32>
    %42 = vector.extract_strided_slice %40 {offsets = [0, 32], sizes = [8, 32], strides = [1, 1]} : vector<8x128xf32> to vector<8x32xf32>
    %43 = vector.extract_strided_slice %40 {offsets = [0, 64], sizes = [8, 32], strides = [1, 1]} : vector<8x128xf32> to vector<8x32xf32>
    %44 = vector.extract_strided_slice %40 {offsets = [0, 96], sizes = [8, 32], strides = [1, 1]} : vector<8x128xf32> to vector<8x32xf32>
    %45 = arith.mulf %42, %30 : vector<8x32xf32>
    %46 = arith.mulf %41, %43 : vector<8x32xf32>
    %47 = arith.addf %45, %46 : vector<8x32xf32>
    %48 = math.tanh %47 : vector<8x32xf32>
    %49 = arith.mulf %44, %48 : vector<8x32xf32>
    %c0_18 = arith.constant 0 : index
    %c0_19 = arith.constant 0 : index
    %50 = vector.load %arg5[%c0_18, %c0_19] : memref<32x32xf32, #tpu.memory_space<vmem>>, vector<8x32xf32>
    tpu.vector_store %arg5[%c0_18, %c0_19], %49 {strides = array<i32>} : memref<32x32xf32, #tpu.memory_space<vmem>>, vector<8x32xf32>,
    %51 = vector.extract_strided_slice %27 {offsets = [8, 0], sizes = [8, 128], strides = [1, 1]} : vector<32x128xf32> to vector<8x128xf32>
    %cst_20 = arith.constant dense<0.000000e+00> : vector<8x128xf32>
    %52 = tpu.matmul %49, %28, %cst_20 {dimension_numbers = #tpu.dot_dimension_numbers<[1], [0], [0], [1], [0, 0, 1, 1], [], []>} : vector<8x32xf32>, vector<32x128xf32>, vector<8x128xf32> -> vector<8x128xf32>
    %53 = arith.addf %51, %52 : vector<8x128xf32>
    %54 = vector.broadcast %8 : vector<1x128xf32> to vector<8x128xf32>
    %55 = arith.mulf %53, %54 : vector<8x128xf32>
    %56 = math.tanh %55 : vector<8x128xf32>
    %57 = vector.broadcast %8 : vector<1x128xf32> to vector<8x128xf32>
    %58 = arith.mulf %57, %56 : vector<8x128xf32>
    %59 = vector.broadcast %11 : vector<1x128xf32> to vector<8x128xf32>
    %60 = arith.addf %58, %59 : vector<8x128xf32>
    %61 = vector.extract_strided_slice %60 {offsets = [0, 0], sizes = [8, 32], strides = [1, 1]} : vector<8x128xf32> to vector<8x32xf32>
    %62 = vector.extract_strided_slice %60 {offsets = [0, 32], sizes = [8, 32], strides = [1, 1]} : vector<8x128xf32> to vector<8x32xf32>
    %63 = vector.extract_strided_slice %60 {offsets = [0, 64], sizes = [8, 32], strides = [1, 1]} : vector<8x128xf32> to vector<8x32xf32>
    %64 = vector.extract_strided_slice %60 {offsets = [0, 96], sizes = [8, 32], strides = [1, 1]} : vector<8x128xf32> to vector<8x32xf32>
    %65 = arith.mulf %62, %47 : vector<8x32xf32>
    %66 = arith.mulf %61, %63 : vector<8x32xf32>
    %67 = arith.addf %65, %66 : vector<8x32xf32>
    %68 = math.tanh %67 : vector<8x32xf32>
    %69 = arith.mulf %64, %68 : vector<8x32xf32>
    %c8 = arith.constant 8 : index
    %c0_21 = arith.constant 0 : index
    %70 = vector.load %arg5[%c8, %c0_21] : memref<32x32xf32, #tpu.memory_space<vmem>>, vector<8x32xf32>
    tpu.vector_store %arg5[%c8, %c0_21], %69 {strides = array<i32>} : memref<32x32xf32, #tpu.memory_space<vmem>>, vector<8x32xf32>,
    %71 = vector.extract_strided_slice %27 {offsets = [16, 0], sizes = [8, 128], strides = [1, 1]} : vector<32x128xf32> to vector<8x128xf32>
    %cst_22 = arith.constant dense<0.000000e+00> : vector<8x128xf32>
    %72 = tpu.matmul %69, %28, %cst_22 {dimension_numbers = #tpu.dot_dimension_numbers<[1], [0], [0], [1], [0, 0, 1, 1], [], []>} : vector<8x32xf32>, vector<32x128xf32>, vector<8x128xf32> -> vector<8x128xf32>
    %73 = arith.addf %71, %72 : vector<8x128xf32>
    %74 = vector.broadcast %8 : vector<1x128xf32> to vector<8x128xf32>
    %75 = arith.mulf %73, %74 : vector<8x128xf32>
    %76 = math.tanh %75 : vector<8x128xf32>
    %77 = vector.broadcast %8 : vector<1x128xf32> to vector<8x128xf32>
    %78 = arith.mulf %77, %76 : vector<8x128xf32>
    %79 = vector.broadcast %11 : vector<1x128xf32> to vector<8x128xf32>
    %80 = arith.addf %78, %79 : vector<8x128xf32>
    %81 = vector.extract_strided_slice %80 {offsets = [0, 0], sizes = [8, 32], strides = [1, 1]} : vector<8x128xf32> to vector<8x32xf32>
    %82 = vector.extract_strided_slice %80 {offsets = [0, 32], sizes = [8, 32], strides = [1, 1]} : vector<8x128xf32> to vector<8x32xf32>
    %83 = vector.extract_strided_slice %80 {offsets = [0, 64], sizes = [8, 32], strides = [1, 1]} : vector<8x128xf32> to vector<8x32xf32>
    %84 = vector.extract_strided_slice %80 {offsets = [0, 96], sizes = [8, 32], strides = [1, 1]} : vector<8x128xf32> to vector<8x32xf32>
    %85 = arith.mulf %82, %67 : vector<8x32xf32>
    %86 = arith.mulf %81, %83 : vector<8x32xf32>
    %87 = arith.addf %85, %86 : vector<8x32xf32>
    %88 = math.tanh %87 : vector<8x32xf32>
    %89 = arith.mulf %84, %88 : vector<8x32xf32>
    %c16_23 = arith.constant 16 : index
    %c0_24 = arith.constant 0 : index
    %90 = vector.load %arg5[%c16_23, %c0_24] : memref<32x32xf32, #tpu.memory_space<vmem>>, vector<8x32xf32>
    tpu.vector_store %arg5[%c16_23, %c0_24], %89 {strides = array<i32>} : memref<32x32xf32, #tpu.memory_space<vmem>>, vector<8x32xf32>,
    %91 = vector.extract_strided_slice %27 {offsets = [24, 0], sizes = [8, 128], strides = [1, 1]} : vector<32x128xf32> to vector<8x128xf32>
    %cst_25 = arith.constant dense<0.000000e+00> : vector<8x128xf32>
    %92 = tpu.matmul %89, %28, %cst_25 {dimension_numbers = #tpu.dot_dimension_numbers<[1], [0], [0], [1], [0, 0, 1, 1], [], []>} : vector<8x32xf32>, vector<32x128xf32>, vector<8x128xf32> -> vector<8x128xf32>
    %93 = arith.addf %91, %92 : vector<8x128xf32>
    %94 = vector.broadcast %8 : vector<1x128xf32> to vector<8x128xf32>
    %95 = arith.mulf %93, %94 : vector<8x128xf32>
    %96 = math.tanh %95 : vector<8x128xf32>
    %97 = vector.broadcast %8 : vector<1x128xf32> to vector<8x128xf32>
    %98 = arith.mulf %97, %96 : vector<8x128xf32>
    %99 = vector.broadcast %11 : vector<1x128xf32> to vector<8x128xf32>
    %100 = arith.addf %98, %99 : vector<8x128xf32>
    %101 = vector.extract_strided_slice %100 {offsets = [0, 0], sizes = [8, 32], strides = [1, 1]} : vector<8x128xf32> to vector<8x32xf32>
    %102 = vector.extract_strided_slice %100 {offsets = [0, 32], sizes = [8, 32], strides = [1, 1]} : vector<8x128xf32> to vector<8x32xf32>
    %103 = vector.extract_strided_slice %100 {offsets = [0, 64], sizes = [8, 32], strides = [1, 1]} : vector<8x128xf32> to vector<8x32xf32>
    %104 = vector.extract_strided_slice %100 {offsets = [0, 96], sizes = [8, 32], strides = [1, 1]} : vector<8x128xf32> to vector<8x32xf32>
    %105 = arith.mulf %102, %87 : vector<8x32xf32>
    %106 = arith.mulf %101, %103 : vector<8x32xf32>
    %107 = arith.addf %105, %106 : vector<8x32xf32>
    %108 = math.tanh %107 : vector<8x32xf32>
    %109 = arith.mulf %104, %108 : vector<8x32xf32>
    %c24_26 = arith.constant 24 : index
    %c0_27 = arith.constant 0 : index
    %110 = vector.load %arg5[%c24_26, %c0_27] : memref<32x32xf32, #tpu.memory_space<vmem>>, vector<8x32xf32>
    tpu.vector_store %arg5[%c24_26, %c0_27], %109 {strides = array<i32>} : memref<32x32xf32, #tpu.memory_space<vmem>>, vector<8x32xf32>,
    %c96 = arith.constant 96 : index
    %c0_28 = arith.constant 0 : index
    %111 = vector.load %arg3[%c96, %c0_28] : memref<176x128xf32, #tpu.memory_space<vmem>>, vector<32x128xf32>
    %c64 = arith.constant 64 : index
    %c0_29 = arith.constant 0 : index
    %112 = vector.load %arg3[%c64, %c0_29] : memref<176x128xf32, #tpu.memory_space<vmem>>, vector<32x128xf32>
    %c128 = arith.constant 128 : index
    %c0_30 = arith.constant 0 : index
    %113 = vector.load %arg3[%c128, %c0_30] : memref<176x128xf32, #tpu.memory_space<vmem>>, vector<1x128xf32>
    %c0_31 = arith.constant 0 : index
    %c0_32 = arith.constant 0 : index
    %114 = vector.load %arg5[%c0_31, %c0_32] : memref<32x32xf32, #tpu.memory_space<vmem>>, vector<32x32xf32>
    %cst_33 = arith.constant dense<0.000000e+00> : vector<32x128xf32>
    %115 = tpu.matmul %114, %112, %cst_33 {dimension_numbers = #tpu.dot_dimension_numbers<[1], [0], [0], [1], [0, 0, 1, 1], [], []>} : vector<32x32xf32>, vector<32x128xf32>, vector<32x128xf32> -> vector<32x128xf32>
    %116 = vector.broadcast %113 : vector<1x128xf32> to vector<32x128xf32>
    %117 = arith.addf %115, %116 : vector<32x128xf32>
    %cst_34 = arith.constant 0.000000e+00 : f32
    %118 = vector.broadcast %cst_34 : f32 to vector<8x32xf32>
    %cst_35 = arith.constant 0.000000e+00 : f32
    %119 = vector.broadcast %cst_35 : f32 to vector<8x32xf32>
    %120 = vector.extract_strided_slice %117 {offsets = [0, 0], sizes = [8, 128], strides = [1, 1]} : vector<32x128xf32> to vector<8x128xf32>
    %cst_36 = arith.constant dense<0.000000e+00> : vector<8x128xf32>
    %121 = tpu.matmul %118, %111, %cst_36 {dimension_numbers = #tpu.dot_dimension_numbers<[1], [0], [0], [1], [0, 0, 1, 1], [], []>} : vector<8x32xf32>, vector<32x128xf32>, vector<8x128xf32> -> vector<8x128xf32>
    %122 = arith.addf %120, %121 : vector<8x128xf32>
    %123 = vector.broadcast %8 : vector<1x128xf32> to vector<8x128xf32>
    %124 = arith.mulf %122, %123 : vector<8x128xf32>
    %125 = math.tanh %124 : vector<8x128xf32>
    %126 = vector.broadcast %8 : vector<1x128xf32> to vector<8x128xf32>
    %127 = arith.mulf %126, %125 : vector<8x128xf32>
    %128 = vector.broadcast %11 : vector<1x128xf32> to vector<8x128xf32>
    %129 = arith.addf %127, %128 : vector<8x128xf32>
    %130 = vector.extract_strided_slice %129 {offsets = [0, 0], sizes = [8, 32], strides = [1, 1]} : vector<8x128xf32> to vector<8x32xf32>
    %131 = vector.extract_strided_slice %129 {offsets = [0, 32], sizes = [8, 32], strides = [1, 1]} : vector<8x128xf32> to vector<8x32xf32>
    %132 = vector.extract_strided_slice %129 {offsets = [0, 64], sizes = [8, 32], strides = [1, 1]} : vector<8x128xf32> to vector<8x32xf32>
    %133 = vector.extract_strided_slice %129 {offsets = [0, 96], sizes = [8, 32], strides = [1, 1]} : vector<8x128xf32> to vector<8x32xf32>
    %134 = arith.mulf %131, %119 : vector<8x32xf32>
    %135 = arith.mulf %130, %132 : vector<8x32xf32>
    %136 = arith.addf %134, %135 : vector<8x32xf32>
    %137 = math.tanh %136 : vector<8x32xf32>
    %138 = arith.mulf %133, %137 : vector<8x32xf32>
    %c0_37 = arith.constant 0 : index
    %c0_38 = arith.constant 0 : index
    %139 = vector.load %arg5[%c0_37, %c0_38] : memref<32x32xf32, #tpu.memory_space<vmem>>, vector<8x32xf32>
    tpu.vector_store %arg5[%c0_37, %c0_38], %138 {strides = array<i32>} : memref<32x32xf32, #tpu.memory_space<vmem>>, vector<8x32xf32>,
    %140 = vector.extract_strided_slice %117 {offsets = [8, 0], sizes = [8, 128], strides = [1, 1]} : vector<32x128xf32> to vector<8x128xf32>
    %cst_39 = arith.constant dense<0.000000e+00> : vector<8x128xf32>
    %141 = tpu.matmul %138, %111, %cst_39 {dimension_numbers = #tpu.dot_dimension_numbers<[1], [0], [0], [1], [0, 0, 1, 1], [], []>} : vector<8x32xf32>, vector<32x128xf32>, vector<8x128xf32> -> vector<8x128xf32>
    %142 = arith.addf %140, %141 : vector<8x128xf32>
    %143 = vector.broadcast %8 : vector<1x128xf32> to vector<8x128xf32>
    %144 = arith.mulf %142, %143 : vector<8x128xf32>
    %145 = math.tanh %144 : vector<8x128xf32>
    %146 = vector.broadcast %8 : vector<1x128xf32> to vector<8x128xf32>
    %147 = arith.mulf %146, %145 : vector<8x128xf32>
    %148 = vector.broadcast %11 : vector<1x128xf32> to vector<8x128xf32>
    %149 = arith.addf %147, %148 : vector<8x128xf32>
    %150 = vector.extract_strided_slice %149 {offsets = [0, 0], sizes = [8, 32], strides = [1, 1]} : vector<8x128xf32> to vector<8x32xf32>
    %151 = vector.extract_strided_slice %149 {offsets = [0, 32], sizes = [8, 32], strides = [1, 1]} : vector<8x128xf32> to vector<8x32xf32>
    %152 = vector.extract_strided_slice %149 {offsets = [0, 64], sizes = [8, 32], strides = [1, 1]} : vector<8x128xf32> to vector<8x32xf32>
    %153 = vector.extract_strided_slice %149 {offsets = [0, 96], sizes = [8, 32], strides = [1, 1]} : vector<8x128xf32> to vector<8x32xf32>
    %154 = arith.mulf %151, %136 : vector<8x32xf32>
    %155 = arith.mulf %150, %152 : vector<8x32xf32>
    %156 = arith.addf %154, %155 : vector<8x32xf32>
    %157 = math.tanh %156 : vector<8x32xf32>
    %158 = arith.mulf %153, %157 : vector<8x32xf32>
    %c8_40 = arith.constant 8 : index
    %c0_41 = arith.constant 0 : index
    %159 = vector.load %arg5[%c8_40, %c0_41] : memref<32x32xf32, #tpu.memory_space<vmem>>, vector<8x32xf32>
    tpu.vector_store %arg5[%c8_40, %c0_41], %158 {strides = array<i32>} : memref<32x32xf32, #tpu.memory_space<vmem>>, vector<8x32xf32>,
    %160 = vector.extract_strided_slice %117 {offsets = [16, 0], sizes = [8, 128], strides = [1, 1]} : vector<32x128xf32> to vector<8x128xf32>
    %cst_42 = arith.constant dense<0.000000e+00> : vector<8x128xf32>
    %161 = tpu.matmul %158, %111, %cst_42 {dimension_numbers = #tpu.dot_dimension_numbers<[1], [0], [0], [1], [0, 0, 1, 1], [], []>} : vector<8x32xf32>, vector<32x128xf32>, vector<8x128xf32> -> vector<8x128xf32>
    %162 = arith.addf %160, %161 : vector<8x128xf32>
    %163 = vector.broadcast %8 : vector<1x128xf32> to vector<8x128xf32>
    %164 = arith.mulf %162, %163 : vector<8x128xf32>
    %165 = math.tanh %164 : vector<8x128xf32>
    %166 = vector.broadcast %8 : vector<1x128xf32> to vector<8x128xf32>
    %167 = arith.mulf %166, %165 : vector<8x128xf32>
    %168 = vector.broadcast %11 : vector<1x128xf32> to vector<8x128xf32>
    %169 = arith.addf %167, %168 : vector<8x128xf32>
    %170 = vector.extract_strided_slice %169 {offsets = [0, 0], sizes = [8, 32], strides = [1, 1]} : vector<8x128xf32> to vector<8x32xf32>
    %171 = vector.extract_strided_slice %169 {offsets = [0, 32], sizes = [8, 32], strides = [1, 1]} : vector<8x128xf32> to vector<8x32xf32>
    %172 = vector.extract_strided_slice %169 {offsets = [0, 64], sizes = [8, 32], strides = [1, 1]} : vector<8x128xf32> to vector<8x32xf32>
    %173 = vector.extract_strided_slice %169 {offsets = [0, 96], sizes = [8, 32], strides = [1, 1]} : vector<8x128xf32> to vector<8x32xf32>
    %174 = arith.mulf %171, %156 : vector<8x32xf32>
    %175 = arith.mulf %170, %172 : vector<8x32xf32>
    %176 = arith.addf %174, %175 : vector<8x32xf32>
    %177 = math.tanh %176 : vector<8x32xf32>
    %178 = arith.mulf %173, %177 : vector<8x32xf32>
    %c16_43 = arith.constant 16 : index
    %c0_44 = arith.constant 0 : index
    %179 = vector.load %arg5[%c16_43, %c0_44] : memref<32x32xf32, #tpu.memory_space<vmem>>, vector<8x32xf32>
    tpu.vector_store %arg5[%c16_43, %c0_44], %178 {strides = array<i32>} : memref<32x32xf32, #tpu.memory_space<vmem>>, vector<8x32xf32>,
    %180 = vector.extract_strided_slice %117 {offsets = [24, 0], sizes = [8, 128], strides = [1, 1]} : vector<32x128xf32> to vector<8x128xf32>
    %cst_45 = arith.constant dense<0.000000e+00> : vector<8x128xf32>
    %181 = tpu.matmul %178, %111, %cst_45 {dimension_numbers = #tpu.dot_dimension_numbers<[1], [0], [0], [1], [0, 0, 1, 1], [], []>} : vector<8x32xf32>, vector<32x128xf32>, vector<8x128xf32> -> vector<8x128xf32>
    %182 = arith.addf %180, %181 : vector<8x128xf32>
    %183 = vector.broadcast %8 : vector<1x128xf32> to vector<8x128xf32>
    %184 = arith.mulf %182, %183 : vector<8x128xf32>
    %185 = math.tanh %184 : vector<8x128xf32>
    %186 = vector.broadcast %8 : vector<1x128xf32> to vector<8x128xf32>
    %187 = arith.mulf %186, %185 : vector<8x128xf32>
    %188 = vector.broadcast %11 : vector<1x128xf32> to vector<8x128xf32>
    %189 = arith.addf %187, %188 : vector<8x128xf32>
    %190 = vector.extract_strided_slice %189 {offsets = [0, 0], sizes = [8, 32], strides = [1, 1]} : vector<8x128xf32> to vector<8x32xf32>
    %191 = vector.extract_strided_slice %189 {offsets = [0, 32], sizes = [8, 32], strides = [1, 1]} : vector<8x128xf32> to vector<8x32xf32>
    %192 = vector.extract_strided_slice %189 {offsets = [0, 64], sizes = [8, 32], strides = [1, 1]} : vector<8x128xf32> to vector<8x32xf32>
    %193 = vector.extract_strided_slice %189 {offsets = [0, 96], sizes = [8, 32], strides = [1, 1]} : vector<8x128xf32> to vector<8x32xf32>
    %194 = arith.mulf %191, %176 : vector<8x32xf32>
    %195 = arith.mulf %190, %192 : vector<8x32xf32>
    %196 = arith.addf %194, %195 : vector<8x32xf32>
    %197 = math.tanh %196 : vector<8x32xf32>
    %198 = arith.mulf %193, %197 : vector<8x32xf32>
    %c24_46 = arith.constant 24 : index
    %c0_47 = arith.constant 0 : index
    %199 = vector.load %arg5[%c24_46, %c0_47] : memref<32x32xf32, #tpu.memory_space<vmem>>, vector<8x32xf32>
    tpu.vector_store %arg5[%c24_46, %c0_47], %198 {strides = array<i32>} : memref<32x32xf32, #tpu.memory_space<vmem>>, vector<8x32xf32>,
    %c136 = arith.constant 136 : index
    %c0_48 = arith.constant 0 : index
    %200 = vector.load %arg3[%c136, %c0_48] : memref<176x128xf32, #tpu.memory_space<vmem>>, vector<32x128xf32>
    %c168 = arith.constant 168 : index
    %c0_49 = arith.constant 0 : index
    %201 = vector.load %arg3[%c168, %c0_49] : memref<176x128xf32, #tpu.memory_space<vmem>>, vector<1x128xf32>
    %c0_50 = arith.constant 0 : index
    %c0_51 = arith.constant 0 : index
    %202 = vector.load %arg5[%c0_50, %c0_51] : memref<32x32xf32, #tpu.memory_space<vmem>>, vector<32x32xf32>
    %cst_52 = arith.constant dense<0.000000e+00> : vector<32x128xf32>
    %203 = tpu.matmul %202, %200, %cst_52 {dimension_numbers = #tpu.dot_dimension_numbers<[1], [0], [0], [1], [0, 0, 1, 1], [], []>} : vector<32x32xf32>, vector<32x128xf32>, vector<32x128xf32> -> vector<32x128xf32>
    %204 = vector.broadcast %201 : vector<1x128xf32> to vector<32x128xf32>
    %205 = arith.addf %203, %204 : vector<32x128xf32>
    %c0_53 = arith.constant 0 : index
    %c0_54 = arith.constant 0 : index
    %c0_55 = arith.constant 0 : index
    %206 = vector.load %arg4[%c0_53, %c0_54, %c0_55] : memref<1x32x128xf32, #tpu.memory_space<vmem>>, vector<1x32x128xf32>
    %207 = vector.shape_cast %206 : vector<1x32x128xf32> to vector<32x128xf32>
    %208 = vector.shape_cast %205 : vector<32x128xf32> to vector<1x32x128xf32>
    tpu.vector_store %arg4[%c0_53, %c0_54, %c0_55], %208 {strides = array<i32>} : memref<1x32x128xf32, #tpu.memory_space<vmem>>, vector<1x32x128xf32>,
    return
  }
  func.func @transform_0(%arg0: i32) -> (i32, i32, i32) {
    %c0_i32 = arith.constant 0 : i32
    %c0_i32_0 = arith.constant 0 : i32
    %c0_i32_1 = arith.constant 0 : i32
    return %arg0, %c0_i32, %c0_i32_0 : i32, i32, i32
  }
  func.func @transform_1(%arg0: i32) -> (i32, i32, i32) {
    %c0_i32 = arith.constant 0 : i32
    %c0_i32_0 = arith.constant 0 : i32
    %c0_i32_1 = arith.constant 0 : i32
    return %arg0, %c0_i32, %c0_i32_0 : i32, i32, i32
  }
  func.func @transform_2(%arg0: i32) -> (i32, i32) {
    %c0_i32 = arith.constant 0 : i32
    %c0_i32_0 = arith.constant 0 : i32
    %c0_i32_1 = arith.constant 0 : i32
    return %c0_i32, %c0_i32_0 : i32, i32
  }
  func.func @transform_3(%arg0: i32) -> (i32, i32, i32) {
    %c0_i32 = arith.constant 0 : i32
    %c0_i32_0 = arith.constant 0 : i32
    %c0_i32_1 = arith.constant 0 : i32
    return %arg0, %c0_i32, %c0_i32_0 : i32, i32, i32
  }
}

</mosaic_0001>

<llo_original>
// kernel: seq2seq_forward.1
$region0: #{seq2seq_forward.1}
  #allocation0 [shape = 'u32[]', space=smem, size = 0x4, offset = 0x4, fixed_abs, tag = 'smem constant byte address 0x4 - core index']
  #allocation1 [shape = 'u32[144,128]{1,0:T(1,128)}', space=vmem, size = 0x12000, scoped, tag = 'internal scratch']
  #allocation2 [shape = 'f32[32,32]{1,0:T(8,128)}', space=vmem, size = 0x4000, scoped, tag = 'scratch operand']
  %s0 = inlined_call_operand.hbm [shape: f32[1,32,8], index: 0, kind: input, shape index: {}]
  %s1 = inlined_call_operand.vmem [shape: f32[1,4,16], index: 1, kind: input, shape index: {}]
  %s2 = inlined_call_operand.hbm [shape: f32[176,128], index: 2, kind: input, shape index: {}]
  %s3 = inlined_call_operand.vmem [shape: f32[1,32,128], index: 3, kind: output, shape index: {}]
  %s4 = sld [smem:[#allocation0]]
  $region30: #{seq2seq_forward.1} parent=0
    _
  %s6 = ssub.s32 1, %s4
  %s7 = scalar_select 0, %s6, %s4
  $region1: #{seq2seq_forward.1} parent=0
    #allocation3 [shape = 'u8[16384]{0}', space=vmem, size = 0x4000, scoped, tag = 'input window, operand 0, single buffered']
    #allocation4 [shape = 's32[1]{0}', space=sflag, size = 0x4, scoped, tag = 'scoped memory for seq2seq_forward.1']
    #allocation5 [shape = 'u8[90112]{0}', space=vmem, size = 0x16000, scoped, tag = 'input window, operand 2, single buffered']
    #allocation6 [shape = 's32[1]{0}', space=sflag, size = 0x4, scoped, tag = 'scoped memory for seq2seq_forward.1']
    %8 = vsyncpa [#allocation4], 0
    %9 = vsyncpa [#allocation6], 0
    // Predicated region
    $region2: #{seq2seq_forward.1} parent=1 // pred_check
      _
    $region3: #{seq2seq_forward.1} parent=1 // pred_check_branch
      %11 = sbr.rel (0) target = $region5
    $region4: #{seq2seq_forward.1} parent=1 // pred_region
      %s13 = ssub.s32 512, 512
      %14 = vsyncadd [#allocation4], %s13
      %s15 = sshll.u32 [#allocation3], 4
      %s16 = int_to_ptr.vmem [resolvable:$true] %s15
      %21 = dma.hbm_to_vmem [thread:$0]  %s0, 512, %s16, [#allocation4], 128, 128, 8
    $region5: #{seq2seq_forward.1} parent=1 // pred_fallthru
      _
    // Predicated region
    $region6: #{seq2seq_forward.1} parent=1 // pred_check
      _
    $region7: #{seq2seq_forward.1} parent=1 // pred_check_branch
      %23 = sbr.rel (0) target = $region9
    $region8: #{seq2seq_forward.1} parent=1 // pred_region
      _
    $region9: #{seq2seq_forward.1} parent=1 // pred_fallthru
      _
    // Predicated region
    $region10: #{seq2seq_forward.1} parent=1 // pred_check
      _
    $region11: #{seq2seq_forward.1} parent=1 // pred_check_branch
      %25 = sbr.rel (0) target = $region13
    $region12: #{seq2seq_forward.1} parent=1 // pred_region
      %s27 = ssub.s32 2816, 2816
      %28 = vsyncadd [#allocation6], %s27
      %s29 = sshll.u32 [#allocation5], 4
      %s30 = int_to_ptr.vmem [resolvable:$true] %s29
      %35 = dma.hbm_to_vmem [thread:$0]  %s2, 2816, %s30, [#allocation6], 128, 128, 8
    $region13: #{seq2seq_forward.1} parent=1 // pred_fallthru
      _
    // Predicated region
    $region14: #{seq2seq_forward.1} parent=1 // pred_check
      _
    $region15: #{seq2seq_forward.1} parent=1 // pred_check_branch
      %37 = sbr.rel (0) target = $region17
    $region16: #{seq2seq_forward.1} parent=1 // pred_region
      %38 = dma.done [#allocation4], 512
    $region17: #{seq2seq_forward.1} parent=1 // pred_fallthru
      _
    // Predicated region
    $region18: #{seq2seq_forward.1} parent=1 // pred_check
      _
    $region19: #{seq2seq_forward.1} parent=1 // pred_check_branch
      %40 = sbr.rel (0) target = $region21
    $region20: #{seq2seq_forward.1} parent=1 // pred_region
      %41 = dma.done [#allocation6], 2816
    $region21: #{seq2seq_forward.1} parent=1 // pred_fallthru
      _
    %v42 = vlaneseq
    %v43 = vand.u32 %v42, 127
    %vm44 = vcmp.ge.s32.totalorder %v43, 64
    %vm45 = vcmp.lt.s32.totalorder %v43, 96
    %vm46 = vmand %vm44, %vm45
    %v47 = vsel %vm46, 1.0, 0.5
    %v48 = vsel %vm46, 0.0, 0.5
    %v49 = vld [vmem:[#allocation5] sm:$0xff]
    %v50 = vld [vmem:[#allocation5 + $0x8] sm:$0xff]
    %v51 = vld [vmem:[#allocation5 + $0x18] sm:$0x1]
    %v52 = vld [vmem:[%s1] sm:$0xf]
    %v53 = vlaneseq
    %v54 = vshrl.u32 %v53, 7
    %v55 = vsub.s32 0, %v54
    %v56 = vrot.slane %v51, %v55
    %vm57 = vcmask 130048
    %v59 = vsel %vm57, %v52, 0
    %61 = vmatprep.subr.mxu0 0.0
    %62 = vmatpush1.msra.mxu0 %v49
    %63 = vmatprep.subr.mxu0 0.0
    %64 = vmatpush1.msra.mxu0 %v50
    %65 = vmatprep.subr.mxu0 0.0
    %66 = vmatpush1.msra.mxu0 0.0
    %67 = vmatprep.subr.mxu0 0.0
    %68 = vmatpush1.msra.mxu0 0.0
    %69 = vmatprep.subr.mxu0 0.0
    %70 = vmatpush1.msra.mxu0 0.0
    %71 = vmatprep.subr.mxu0 0.0
    %72 = vmatpush1.msra.mxu0 0.0
    %73 = vmatprep.subr.mxu0 0.0
    %74 = vmatpush1.msra.mxu0 0.0
    %75 = vmatprep.subr.mxu0 0.0
    %76 = vmatpush1.msra.mxu0 0.0
    %77 = vmatprep.subr.mxu0 0.0
    %78 = vmatpush1.msra.mxu0 0.0
    %79 = vmatprep.subr.mxu0 0.0
    %80 = vmatpush1.msra.mxu0 0.0
    %81 = vmatprep.subr.mxu0 0.0
    %82 = vmatpush1.msra.mxu0 0.0
    %83 = vmatprep.subr.mxu0 0.0
    %84 = vmatpush1.msra.mxu0 0.0
    %85 = vmatprep.subr.mxu0 0.0
    %86 = vmatpush1.msra.mxu0 0.0
    %87 = vmatprep.subr.mxu0 0.0
    %88 = vmatpush1.msra.mxu0 0.0
    %89 = vmatprep.subr.mxu0 0.0
    %90 = vmatpush1.msra.mxu0 0.0
    %91 = vmatprep.subr.mxu0 0.0
    %92 = vmatpush1.msra.mxu0 0.0
    %93 = vmatprep.subr.mxu0 0.0
    %94 = vmatpush1.msra.mxu0 0.0
    %95 = vmatprep.subr.mxu0 0.0
    %96 = vmatpush1.msra.mxu0 0.0
    %97 = vmatprep.subr.mxu0 0.0
    %98 = vmatpush1.msra.mxu0 0.0
    %99 = vmatprep.subr.mxu0 0.0
    %100 = vmatpush1.msra.mxu0 0.0
    %101 = vmatprep.subr.mxu0 0.0
    %102 = vmatpush1.msra.mxu0 0.0
    %103 = vmatprep.subr.mxu0 0.0
    %104 = vmatpush1.msra.mxu0 0.0
    %105 = vmatprep.subr.mxu0 0.0
    %106 = vmatpush1.msra.mxu0 0.0
    %107 = vmatprep.subr.mxu0 0.0
    %108 = vmatpush1.msra.mxu0 0.0
    %109 = vmatprep.subr.mxu0 0.0
    %110 = vmatpush1.msra.mxu0 0.0
    %111 = vmatprep.subr.mxu0 0.0
    %112 = vmatpush1.msra.mxu0 0.0
    %113 = vmatprep.subr.mxu0 0.0
    %114 = vmatpush1.msra.mxu0 0.0
    %115 = vmatprep.subr.mxu0 0.0
    %116 = vmatpush1.msra.mxu0 0.0
    %117 = vmatprep.subr.mxu0 0.0
    %118 = vmatpush1.msra.mxu0 0.0
    %119 = vmatprep.subr.mxu0 0.0
    %120 = vmatpush1.msra.mxu0 0.0
    %121 = vmatprep.subr.mxu0 0.0
    %122 = vmatpush1.msra.mxu0 0.0
    %123 = vmatprep.subr.mxu0 0.0
    %124 = vmatpush1.msra.mxu0 0.0
    %125 = vmatprep.mubr.f32.mxu0 0.0
    %126 = vmatmul.mubr.f32.gmra.mrb[0].mxu0 %v59
    %v127 = vpop.f32.mrb[0].mxu0
    %v128 = vadd.f32 %v56, %v127
    %v129 = vpop.f32.mrb[0].mxu0
    %130 = vdwg.mxu0
    %v131 = vld [vmem:[#allocation5 + $0x10] sm:$0xff]
    %v132 = vld [vmem:[#allocation3] sm:$0xff]
    %v133 = vld [vmem:[#allocation3 + $0x8] sm:$0xff]
    %v134 = vld [vmem:[#allocation3 + $0x10] sm:$0xff]
    %v135 = vld [vmem:[#allocation3 + $0x18] sm:$0xff]
    %vm136 = vcmask 64512
    %v138 = vsel %vm136, %v132, 0
    %v141 = vsel %vm136, %v133, 0
    %v144 = vsel %vm136, %v134, 0
    %v147 = vsel %vm136, %v135, 0
    %149 = vmatprep.subr.mxu0 0.0
    %150 = vmatpush1.msra.mxu0 %v131
    %151 = vmatprep.subr.mxu0 0.0
    %152 = vmatpush1.msra.mxu0 0.0
    %153 = vmatprep.subr.mxu0 0.0
    %154 = vmatpush1.msra.mxu0 0.0
    %155 = vmatprep.subr.mxu0 0.0
    %156 = vmatpush1.msra.mxu0 0.0
    %157 = vmatprep.subr.mxu0 0.0
    %158 = vmatpush1.msra.mxu0 0.0
    %159 = vmatprep.subr.mxu0 0.0
    %160 = vmatpush1.msra.mxu0 0.0
    %161 = vmatprep.subr.mxu0 0.0
    %162 = vmatpush1.msra.mxu0 0.0
    %163 = vmatprep.subr.mxu0 0.0
    %164 = vmatpush1.msra.mxu0 0.0
    %165 = vmatprep.subr.mxu0 0.0
    %166 = vmatpush1.msra.mxu0 0.0
    %167 = vmatprep.subr.mxu0 0.0
    %168 = vmatpush1.msra.mxu0 0.0
    %169 = vmatprep.subr.mxu0 0.0
    %170 = vmatpush1.msra.mxu0 0.0
    %171 = vmatprep.subr.mxu0 0.0
    %172 = vmatpush1.msra.mxu0 0.0
    %173 = vmatprep.subr.mxu0 0.0
    %174 = vmatpush1.msra.mxu0 0.0
    %175 = vmatprep.subr.mxu0 0.0
    %176 = vmatpush1.msra.mxu0 0.0
    %177 = vmatprep.subr.mxu0 0.0
    %178 = vmatpush1.msra.mxu0 0.0
    %179 = vmatprep.subr.mxu0 0.0
    %180 = vmatpush1.msra.mxu0 0.0
    %181 = vmatprep.subr.mxu0 0.0
    %182 = vmatpush1.msra.mxu0 0.0
    %183 = vmatprep.subr.mxu0 0.0
    %184 = vmatpush1.msra.mxu0 0.0
    %185 = vmatprep.subr.mxu0 0.0
    %186 = vmatpush1.msra.mxu0 0.0
    %187 = vmatprep.subr.mxu0 0.0
    %188 = vmatpush1.msra.mxu0 0.0
    %189 = vmatprep.subr.mxu0 0.0
    %190 = vmatpush1.msra.mxu0 0.0
    %191 = vmatprep.subr.mxu0 0.0
    %192 = vmatpush1.msra.mxu0 0.0
    %193 = vmatprep.subr.mxu0 0.0
    %194 = vmatpush1.msra.mxu0 0.0
    %195 = vmatprep.subr.mxu0 0.0
    %196 = vmatpush1.msra.mxu0 0.0
    %197 = vmatprep.subr.mxu0 0.0
    %198 = vmatpush1.msra.mxu0 0.0
    %199 = vmatprep.subr.mxu0 0.0
    %200 = vmatpush1.msra.mxu0 0.0
    %201 = vmatprep.subr.mxu0 0.0
    %202 = vmatpush1.msra.mxu0 0.0
    %203 = vmatprep.subr.mxu0 0.0
    %204 = vmatpush1.msra.mxu0 0.0
    %205 = vmatprep.subr.mxu0 0.0
    %206 = vmatpush1.msra.mxu0 0.0
    %207 = vmatprep.subr.mxu0 0.0
    %208 = vmatpush1.msra.mxu0 0.0
    %209 = vmatprep.subr.mxu0 0.0
    %210 = vmatpush1.msra.mxu0 0.0
    %211 = vmatprep.subr.mxu0 0.0
    %212 = vmatpush1.msra.mxu0 0.0
    %213 = vmatprep.mubr.f32.mxu0 0.0
    %214 = vmatmul.mubr.f32.gmra.mrb[0].mxu0 %v138
    %v215 = vpop.f32.mrb[0].mxu0
    %v216 = vadd.f32 0.0, %v215
    %v217 = vpop.f32.mrb[0].mxu0
    %218 = vmatprep.mubr.f32.mxu0 0.0
    %219 = vmatmul.mubr.f32.gmra.mrb[0].mxu0 %v141
    %v220 = vpop.f32.mrb[0].mxu0
    %v221 = vadd.f32 0.0, %v220
    %v222 = vpop.f32.mrb[0].mxu0
    %223 = vmatprep.mubr.f32.mxu0 0.0
    %224 = vmatmul.mubr.f32.gmra.mrb[0].mxu0 %v144
    %v225 = vpop.f32.mrb[0].mxu0
    %v226 = vadd.f32 0.0, %v225
    %v227 = vpop.f32.mrb[0].mxu0
    %228 = vmatprep.mubr.f32.mxu0 0.0
    %229 = vmatmul.mubr.f32.gmra.mrb[0].mxu0 %v147
    %v230 = vpop.f32.mrb[0].mxu0
    %v231 = vadd.f32 0.0, %v230
    %v232 = vpop.f32.mrb[0].mxu0
    %233 = vdwg.mxu0
    %v236 = vunpack.c.l.s4 1966171168
    %v237 = vunpack.c.0.s8 %v236
    %v238 = vlaneseq
    %v239 = vshrl.u32 %v238, 7
    %v240 = vsub.s32 %v237, %v239
    %v241 = vrot.slane %v128, %v240
    %v242 = vcombine.high %v241, %v241
    %v244 = vunpack.c.l.s4 1966171168
    %v245 = vunpack.c.0.s8 %v244
    %v246 = vlaneseq
    %v247 = vshrl.u32 %v246, 7
    %v248 = vsub.s32 %v245, %v247
    %v249 = vrot.slane %v241, %v248
    %v251 = vunpack.c.l.s4 1966171168
    %v252 = vunpack.c.0.s8 %v251
    %v253 = vlaneseq
    %v254 = vshrl.u32 %v253, 7
    %v255 = vsub.s32 %v252, %v254
    %v256 = vrot.slane %v242, %v255
    %v257 = vcombine.high %v249, %v249
    %v258 = vcombine.high %v256, %v256
    %v259 = vlaneseq
    %v260 = vshrl.u32 %v259, 7
    %v261 = vsub.s32 0, %v260
    %v262 = vrot.slane %v249, %v261
    %v263 = vlaneseq
    %v264 = vshrl.u32 %v263, 7
    %v265 = vsub.s32 0, %v264
    %v266 = vrot.slane %v256, %v265
    %v267 = vlaneseq
    %v268 = vshrl.u32 %v267, 7
    %v269 = vsub.s32 0, %v268
    %v270 = vrot.slane %v257, %v269
    %v271 = vlaneseq
    %v272 = vshrl.u32 %v271, 7
    %v273 = vsub.s32 0, %v272
    %v274 = vrot.slane %v258, %v273
    %v279 = vadd.f32 %v216, %v262
    %v280 = vadd.f32 %v221, %v266
    %v281 = vadd.f32 %v226, %v270
    %v282 = vadd.f32 %v231, %v274
    %v283 = vld [vmem:[#allocation5 + $0x20] sm:$0xff]
    %v284 = vld [vmem:[#allocation5 + $0x28] sm:$0xff]
    %v285 = vld [vmem:[#allocation5 + $0x30] sm:$0xff]
    %v286 = vld [vmem:[#allocation5 + $0x38] sm:$0xff]
    %vm287 = vcmask 261120
    %v289 = vsel %vm287, 0.0, 0
    %291 = vmatprep.subr.mxu0 0.0
    %292 = vmatpush1.msra.mxu0 %v283
    %293 = vmatprep.subr.mxu0 0.0
    %294 = vmatpush1.msra.mxu0 %v284
    %295 = vmatprep.subr.mxu0 0.0
    %296 = vmatpush1.msra.mxu0 %v285
    %297 = vmatprep.subr.mxu0 0.0
    %298 = vmatpush1.msra.mxu0 %v286
    %299 = vmatprep.subr.mxu0 0.0
    %300 = vmatpush1.msra.mxu0 0.0
    %301 = vmatprep.subr.mxu0 0.0
    %302 = vmatpush1.msra.mxu0 0.0
    %303 = vmatprep.subr.mxu0 0.0
    %304 = vmatpush1.msra.mxu0 0.0
    %305 = vmatprep.subr.mxu0 0.0
    %306 = vmatpush1.msra.mxu0 0.0
    %307 = vmatprep.subr.mxu0 0.0
    %308 = vmatpush1.msra.mxu0 0.0
    %309 = vmatprep.subr.mxu0 0.0
    %310 = vmatpush1.msra.mxu0 0.0
    %311 = vmatprep.subr.mxu0 0.0
    %312 = vmatpush1.msra.mxu0 0.0
    %313 = vmatprep.subr.mxu0 0.0
    %314 = vmatpush1.msra.mxu0 0.0
    %315 = vmatprep.subr.mxu0 0.0
    %316 = vmatpush1.msra.mxu0 0.0
    %317 = vmatprep.subr.mxu0 0.0
    %318 = vmatpush1.msra.mxu0 0.0
    %319 = vmatprep.subr.mxu0 0.0
    %320 = vmatpush1.msra.mxu0 0.0
    %321 = vmatprep.subr.mxu0 0.0
    %322 = vmatpush1.msra.mxu0 0.0
    %323 = vmatprep.subr.mxu0 0.0
    %324 = vmatpush1.msra.mxu0 0.0
    %325 = vmatprep.subr.mxu0 0.0
    %326 = vmatpush1.msra.mxu0 0.0
    %327 = vmatprep.subr.mxu0 0.0
    %328 = vmatpush1.msra.mxu0 0.0
    %329 = vmatprep.subr.mxu0 0.0
    %330 = vmatpush1.msra.mxu0 0.0
    %331 = vmatprep.subr.mxu0 0.0
    %332 = vmatpush1.msra.mxu0 0.0
    %333 = vmatprep.subr.mxu0 0.0
    %334 = vmatpush1.msra.mxu0 0.0
    %335 = vmatprep.subr.mxu0 0.0
    %336 = vmatpush1.msra.mxu0 0.0
    %337 = vmatprep.subr.mxu0 0.0
    %338 = vmatpush1.msra.mxu0 0.0
    %339 = vmatprep.subr.mxu0 0.0
    %340 = vmatpush1.msra.mxu0 0.0
    %341 = vmatprep.subr.mxu0 0.0
    %342 = vmatpush1.msra.mxu0 0.0
    %343 = vmatprep.subr.mxu0 0.0
    %344 = vmatpush1.msra.mxu0 0.0
    %345 = vmatprep.subr.mxu0 0.0
    %346 = vmatpush1.msra.mxu0 0.0
    %347 = vmatprep.subr.mxu0 0.0
    %348 = vmatpush1.msra.mxu0 0.0
    %349 = vmatprep.subr.mxu0 0.0
    %350 = vmatpush1.msra.mxu0 0.0
    %351 = vmatprep.subr.mxu0 0.0
    %352 = vmatpush1.msra.mxu0 0.0
    %353 = vmatprep.subr.mxu0 0.0
    %354 = vmatpush1.msra.mxu0 0.0
    %355 = vmatprep.mubr.f32.mxu0 0.0
    %356 = vmatmul.mubr.f32.gmra.mrb[0].mxu0 %v289
    %v357 = vpop.f32.mrb[0].mxu0
    %v358 = vadd.f32 0.0, %v357
    %v359 = vpop.f32.mrb[0].mxu0
    %360 = vdwg.mxu0
    %v361 = vadd.f32 %v279, %v358
    %v362 = vmul.f32 %v361, %v47
    %v363 = vtanh.pop %v362
    %v364 = vmul.f32 %v47, %v363
    %v365 = vadd.f32 %v364, %v48
    %v366 = vmul.f32 %v365, 0.0
    %368 = vrot.lane.b32.xlu0 %v365, 64
    %v369 = vpop.permute.xlu0 %368
    %v371 = vmul.f32 %v365, %v369
    %373 = vrot.lane.b32.xlu0 %v371, 32
    %v374 = vpop.permute.xlu0 %373
    %v376 = vadd.f32 %v366, %v374
    %v377 = vtanh.pop %v376
    %379 = vrot.lane.b32.xlu0 %v377, 64
    %v380 = vpop.permute.xlu0 %379
    %v382 = vmul.f32 %v365, %v380
    %384 = vrot.lane.b32.xlu0 %v382, 32
    %v385 = vpop.permute.xlu0 %384
    %387 = vst.msk [vmem:[#allocation2] sm:$0xff] %vm287, %v385
    %v388 = vsel %vm287, %v385, 0
    %390 = vmatprep.subr.mxu0 0.0
    %391 = vmatpush1.msra.mxu0 %v283
    %392 = vmatprep.subr.mxu0 0.0
    %393 = vmatpush1.msra.mxu0 %v284
    %394 = vmatprep.subr.mxu0 0.0
    %395 = vmatpush1.msra.mxu0 %v285
    %396 = vmatprep.subr.mxu0 0.0
    %397 = vmatpush1.msra.mxu0 %v286
    %398 = vmatprep.subr.mxu0 0.0
    %399 = vmatpush1.msra.mxu0 0.0
    %400 = vmatprep.subr.mxu0 0.0
    %401 = vmatpush1.msra.mxu0 0.0
    %402 = vmatprep.subr.mxu0 0.0
    %403 = vmatpush1.msra.mxu0 0.0
    %404 = vmatprep.subr.mxu0 0.0
    %405 = vmatpush1.msra.mxu0 0.0
    %406 = vmatprep.subr.mxu0 0.0
    %407 = vmatpush1.msra.mxu0 0.0
    %408 = vmatprep.subr.mxu0 0.0
    %409 = vmatpush1.msra.mxu0 0.0
    %410 = vmatprep.subr.mxu0 0.0
    %411 = vmatpush1.msra.mxu0 0.0
    %412 = vmatprep.subr.mxu0 0.0
    %413 = vmatpush1.msra.mxu0 0.0
    %414 = vmatprep.subr.mxu0 0.0
    %415 = vmatpush1.msra.mxu0 0.0
    %416 = vmatprep.subr.mxu0 0.0
    %417 = vmatpush1.msra.mxu0 0.0
    %418 = vmatprep.subr.mxu0 0.0
    %419 = vmatpush1.msra.mxu0 0.0
    %420 = vmatprep.subr.mxu0 0.0
    %421 = vmatpush1.msra.mxu0 0.0
    %422 = vmatprep.subr.mxu0 0.0
    %423 = vmatpush1.msra.mxu0 0.0
    %424 = vmatprep.subr.mxu0 0.0
    %425 = vmatpush1.msra.mxu0 0.0
    %426 = vmatprep.subr.mxu0 0.0
    %427 = vmatpush1.msra.mxu0 0.0
    %428 = vmatprep.subr.mxu0 0.0
    %429 = vmatpush1.msra.mxu0 0.0
    %430 = vmatprep.subr.mxu0 0.0
    %431 = vmatpush1.msra.mxu0 0.0
    %432 = vmatprep.subr.mxu0 0.0
    %433 = vmatpush1.msra.mxu0 0.0
    %434 = vmatprep.subr.mxu0 0.0
    %435 = vmatpush1.msra.mxu0 0.0
    %436 = vmatprep.subr.mxu0 0.0
    %437 = vmatpush1.msra.mxu0 0.0
    %438 = vmatprep.subr.mxu0 0.0
    %439 = vmatpush1.msra.mxu0 0.0
    %440 = vmatprep.subr.mxu0 0.0
    %441 = vmatpush1.msra.mxu0 0.0
    %442 = vmatprep.subr.mxu0 0.0
    %443 = vmatpush1.msra.mxu0 0.0
    %444 = vmatprep.subr.mxu0 0.0
    %445 = vmatpush1.msra.mxu0 0.0
    %446 = vmatprep.subr.mxu0 0.0
    %447 = vmatpush1.msra.mxu0 0.0
    %448 = vmatprep.subr.mxu0 0.0
    %449 = vmatpush1.msra.mxu0 0.0
    %450 = vmatprep.subr.mxu0 0.0
    %451 = vmatpush1.msra.mxu0 0.0
    %452 = vmatprep.subr.mxu0 0.0
    %453 = vmatpush1.msra.mxu0 0.0
    %454 = vmatprep.mubr.f32.mxu0 0.0
    %455 = vmatmul.mubr.f32.gmra.mrb[0].mxu0 %v388
    %v456 = vpop.f32.mrb[0].mxu0
    %v457 = vadd.f32 0.0, %v456
    %v458 = vpop.f32.mrb[0].mxu0
    %459 = vdwg.mxu0
    %v460 = vadd.f32 %v280, %v457
    %v461 = vmul.f32 %v460, %v47
    %v462 = vtanh.pop %v461
    %v463 = vmul.f32 %v47, %v462
    %v464 = vadd.f32 %v463, %v48
    %v465 = vmul.f32 %v464, %v376
    %467 = vrot.lane.b32.xlu0 %v464, 64
    %v468 = vpop.permute.xlu0 %467
    %v470 = vmul.f32 %v464, %v468
    %472 = vrot.lane.b32.xlu0 %v470, 32
    %v473 = vpop.permute.xlu0 %472
    %v475 = vadd.f32 %v465, %v473
    %v476 = vtanh.pop %v475
    %478 = vrot.lane.b32.xlu0 %v476, 64
    %v479 = vpop.permute.xlu0 %478
    %v481 = vmul.f32 %v464, %v479
    %483 = vrot.lane.b32.xlu0 %v481, 32
    %v484 = vpop.permute.xlu0 %483
    %486 = vst.msk [vmem:[#allocation2 + $0x8] sm:$0xff] %vm287, %v484
    %v487 = vsel %vm287, %v484, 0
    %489 = vmatprep.subr.mxu0 0.0
    %490 = vmatpush1.msra.mxu0 %v283
    %491 = vmatprep.subr.mxu0 0.0
    %492 = vmatpush1.msra.mxu0 %v284
    %493 = vmatprep.subr.mxu0 0.0
    %494 = vmatpush1.msra.mxu0 %v285
    %495 = vmatprep.subr.mxu0 0.0
    %496 = vmatpush1.msra.mxu0 %v286
    %497 = vmatprep.subr.mxu0 0.0
    %498 = vmatpush1.msra.mxu0 0.0
    %499 = vmatprep.subr.mxu0 0.0
    %500 = vmatpush1.msra.mxu0 0.0
    %501 = vmatprep.subr.mxu0 0.0
    %502 = vmatpush1.msra.mxu0 0.0
    %503 = vmatprep.subr.mxu0 0.0
    %504 = vmatpush1.msra.mxu0 0.0
    %505 = vmatprep.subr.mxu0 0.0
    %506 = vmatpush1.msra.mxu0 0.0
    %507 = vmatprep.subr.mxu0 0.0
    %508 = vmatpush1.msra.mxu0 0.0
    %509 = vmatprep.subr.mxu0 0.0
    %510 = vmatpush1.msra.mxu0 0.0
    %511 = vmatprep.subr.mxu0 0.0
    %512 = vmatpush1.msra.mxu0 0.0
    %513 = vmatprep.subr.mxu0 0.0
    %514 = vmatpush1.msra.mxu0 0.0
    %515 = vmatprep.subr.mxu0 0.0
    %516 = vmatpush1.msra.mxu0 0.0
    %517 = vmatprep.subr.mxu0 0.0
    %518 = vmatpush1.msra.mxu0 0.0
    %519 = vmatprep.subr.mxu0 0.0
    %520 = vmatpush1.msra.mxu0 0.0
    %521 = vmatprep.subr.mxu0 0.0
    %522 = vmatpush1.msra.mxu0 0.0
    %523 = vmatprep.subr.mxu0 0.0
    %524 = vmatpush1.msra.mxu0 0.0
    %525 = vmatprep.subr.mxu0 0.0
    %526 = vmatpush1.msra.mxu0 0.0
    %527 = vmatprep.subr.mxu0 0.0
    %528 = vmatpush1.msra.mxu0 0.0
    %529 = vmatprep.subr.mxu0 0.0
    %530 = vmatpush1.msra.mxu0 0.0
    %531 = vmatprep.subr.mxu0 0.0
    %532 = vmatpush1.msra.mxu0 0.0
    %533 = vmatprep.subr.mxu0 0.0
    %534 = vmatpush1.msra.mxu0 0.0
    %535 = vmatprep.subr.mxu0 0.0
    %536 = vmatpush1.msra.mxu0 0.0
    %537 = vmatprep.subr.mxu0 0.0
    %538 = vmatpush1.msra.mxu0 0.0
    %539 = vmatprep.subr.mxu0 0.0
    %540 = vmatpush1.msra.mxu0 0.0
    %541 = vmatprep.subr.mxu0 0.0
    %542 = vmatpush1.msra.mxu0 0.0
    %543 = vmatprep.subr.mxu0 0.0
    %544 = vmatpush1.msra.mxu0 0.0
    %545 = vmatprep.subr.mxu0 0.0
    %546 = vmatpush1.msra.mxu0 0.0
    %547 = vmatprep.subr.mxu0 0.0
    %548 = vmatpush1.msra.mxu0 0.0
    %549 = vmatprep.subr.mxu0 0.0
    %550 = vmatpush1.msra.mxu0 0.0
    %551 = vmatprep.subr.mxu0 0.0
    %552 = vmatpush1.msra.mxu0 0.0
    %553 = vmatprep.mubr.f32.mxu0 0.0
    %554 = vmatmul.mubr.f32.gmra.mrb[0].mxu0 %v487
    %v555 = vpop.f32.mrb[0].mxu0
    %v556 = vadd.f32 0.0, %v555
    %v557 = vpop.f32.mrb[0].mxu0
    %558 = vdwg.mxu0
    %v559 = vadd.f32 %v281, %v556
    %v560 = vmul.f32 %v559, %v47
    %v561 = vtanh.pop %v560
    %v562 = vmul.f32 %v47, %v561
    %v563 = vadd.f32 %v562, %v48
    %v564 = vmul.f32 %v563, %v475
    %566 = vrot.lane.b32.xlu0 %v563, 64
    %v567 = vpop.permute.xlu0 %566
    %v569 = vmul.f32 %v563, %v567
    %571 = vrot.lane.b32.xlu0 %v569, 32
    %v572 = vpop.permute.xlu0 %571
    %v574 = vadd.f32 %v564, %v572
    %v575 = vtanh.pop %v574
    %577 = vrot.lane.b32.xlu0 %v575, 64
    %v578 = vpop.permute.xlu0 %577
    %v580 = vmul.f32 %v563, %v578
    %582 = vrot.lane.b32.xlu0 %v580, 32
    %v583 = vpop.permute.xlu0 %582
    %585 = vst.msk [vmem:[#allocation2 + $0x10] sm:$0xff] %vm287, %v583
    %v586 = vsel %vm287, %v583, 0
    %588 = vmatprep.subr.mxu0 0.0
    %589 = vmatpush1.msra.mxu0 %v283
    %590 = vmatprep.subr.mxu0 0.0
    %591 = vmatpush1.msra.mxu0 %v284
    %592 = vmatprep.subr.mxu0 0.0
    %593 = vmatpush1.msra.mxu0 %v285
    %594 = vmatprep.subr.mxu0 0.0
    %595 = vmatpush1.msra.mxu0 %v286
    %596 = vmatprep.subr.mxu0 0.0
    %597 = vmatpush1.msra.mxu0 0.0
    %598 = vmatprep.subr.mxu0 0.0
    %599 = vmatpush1.msra.mxu0 0.0
    %600 = vmatprep.subr.mxu0 0.0
    %601 = vmatpush1.msra.mxu0 0.0
    %602 = vmatprep.subr.mxu0 0.0
    %603 = vmatpush1.msra.mxu0 0.0
    %604 = vmatprep.subr.mxu0 0.0
    %605 = vmatpush1.msra.mxu0 0.0
    %606 = vmatprep.subr.mxu0 0.0
    %607 = vmatpush1.msra.mxu0 0.0
    %608 = vmatprep.subr.mxu0 0.0
    %609 = vmatpush1.msra.mxu0 0.0
    %610 = vmatprep.subr.mxu0 0.0
    %611 = vmatpush1.msra.mxu0 0.0
    %612 = vmatprep.subr.mxu0 0.0
    %613 = vmatpush1.msra.mxu0 0.0
    %614 = vmatprep.subr.mxu0 0.0
    %615 = vmatpush1.msra.mxu0 0.0
    %616 = vmatprep.subr.mxu0 0.0
    %617 = vmatpush1.msra.mxu0 0.0
    %618 = vmatprep.subr.mxu0 0.0
    %619 = vmatpush1.msra.mxu0 0.0
    %620 = vmatprep.subr.mxu0 0.0
    %621 = vmatpush1.msra.mxu0 0.0
    %622 = vmatprep.subr.mxu0 0.0
    %623 = vmatpush1.msra.mxu0 0.0
    %624 = vmatprep.subr.mxu0 0.0
    %625 = vmatpush1.msra.mxu0 0.0
    %626 = vmatprep.subr.mxu0 0.0
    %627 = vmatpush1.msra.mxu0 0.0
    %628 = vmatprep.subr.mxu0 0.0
    %629 = vmatpush1.msra.mxu0 0.0
    %630 = vmatprep.subr.mxu0 0.0
    %631 = vmatpush1.msra.mxu0 0.0
    %632 = vmatprep.subr.mxu0 0.0
    %633 = vmatpush1.msra.mxu0 0.0
    %634 = vmatprep.subr.mxu0 0.0
    %635 = vmatpush1.msra.mxu0 0.0
    %636 = vmatprep.subr.mxu0 0.0
    %637 = vmatpush1.msra.mxu0 0.0
    %638 = vmatprep.subr.mxu0 0.0
    %639 = vmatpush1.msra.mxu0 0.0
    %640 = vmatprep.subr.mxu0 0.0
    %641 = vmatpush1.msra.mxu0 0.0
    %642 = vmatprep.subr.mxu0 0.0
    %643 = vmatpush1.msra.mxu0 0.0
    %644 = vmatprep.subr.mxu0 0.0
    %645 = vmatpush1.msra.mxu0 0.0
    %646 = vmatprep.subr.mxu0 0.0
    %647 = vmatpush1.msra.mxu0 0.0
    %648 = vmatprep.subr.mxu0 0.0
    %649 = vmatpush1.msra.mxu0 0.0
    %650 = vmatprep.subr.mxu0 0.0
    %651 = vmatpush1.msra.mxu0 0.0
    %652 = vmatprep.mubr.f32.mxu0 0.0
    %653 = vmatmul.mubr.f32.gmra.mrb[0].mxu0 %v586
    %v654 = vpop.f32.mrb[0].mxu0
    %v655 = vadd.f32 0.0, %v654
    %v656 = vpop.f32.mrb[0].mxu0
    %657 = vdwg.mxu0
    %v658 = vadd.f32 %v282, %v655
    %v659 = vmul.f32 %v658, %v47
    %v660 = vtanh.pop %v659
    %v661 = vmul.f32 %v47, %v660
    %v662 = vadd.f32 %v661, %v48
    %v663 = vmul.f32 %v662, %v574
    %665 = vrot.lane.b32.xlu0 %v662, 64
    %v666 = vpop.permute.xlu0 %665
    %v668 = vmul.f32 %v662, %v666
    %670 = vrot.lane.b32.xlu0 %v668, 32
    %v671 = vpop.permute.xlu0 %670
    %v673 = vadd.f32 %v663, %v671
    %v674 = vtanh.pop %v673
    %676 = vrot.lane.b32.xlu0 %v674, 64
    %v677 = vpop.permute.xlu0 %676
    %v679 = vmul.f32 %v662, %v677
    %681 = vrot.lane.b32.xlu0 %v679, 32
    %v682 = vpop.permute.xlu0 %681
    %684 = vst.msk [vmem:[#allocation2 + $0x18] sm:$0xff] %vm287, %v682
    %v685 = vld [vmem:[#allocation5 + $0x60] sm:$0xff]
    %v686 = vld [vmem:[#allocation5 + $0x68] sm:$0xff]
    %v687 = vld [vmem:[#allocation5 + $0x70] sm:$0xff]
    %v688 = vld [vmem:[#allocation5 + $0x78] sm:$0xff]
    %v689 = vld [vmem:[#allocation5 + $0x40] sm:$0xff]
    %v690 = vld [vmem:[#allocation5 + $0x48] sm:$0xff]
    %v691 = vld [vmem:[#allocation5 + $0x50] sm:$0xff]
    %v692 = vld [vmem:[#allocation5 + $0x58] sm:$0xff]
    %v693 = vld [vmem:[#allocation5 + $0x80] sm:$0x1]
    %v694 = vld [vmem:[#allocation2] sm:$0xff]
    %v695 = vld [vmem:[#allocation2 + $0x8] sm:$0xff]
    %v696 = vld [vmem:[#allocation2 + $0x10] sm:$0xff]
    %v697 = vld [vmem:[#allocation2 + $0x18] sm:$0xff]
    %v698 = vlaneseq
    %v699 = vshrl.u32 %v698, 7
    %v700 = vsub.s32 0, %v699
    %v701 = vrot.slane %v693, %v700
    %v703 = vsel %vm287, %v694, 0
    %v706 = vsel %vm287, %v695, 0
    %v709 = vsel %vm287, %v696, 0
    %v712 = vsel %vm287, %v697, 0
    %714 = vmatprep.subr.mxu0 0.0
    %715 = vmatpush1.msra.mxu0 %v689
    %716 = vmatprep.subr.mxu0 0.0
    %717 = vmatpush1.msra.mxu0 %v690
    %718 = vmatprep.subr.mxu0 0.0
    %719 = vmatpush1.msra.mxu0 %v691
    %720 = vmatprep.subr.mxu0 0.0
    %721 = vmatpush1.msra.mxu0 %v692
    %722 = vmatprep.subr.mxu0 0.0
    %723 = vmatpush1.msra.mxu0 0.0
    %724 = vmatprep.subr.mxu0 0.0
    %725 = vmatpush1.msra.mxu0 0.0
    %726 = vmatprep.subr.mxu0 0.0
    %727 = vmatpush1.msra.mxu0 0.0
    %728 = vmatprep.subr.mxu0 0.0
    %729 = vmatpush1.msra.mxu0 0.0
    %730 = vmatprep.subr.mxu0 0.0
    %731 = vmatpush1.msra.mxu0 0.0
    %732 = vmatprep.subr.mxu0 0.0
    %733 = vmatpush1.msra.mxu0 0.0
    %734 = vmatprep.subr.mxu0 0.0
    %735 = vmatpush1.msra.mxu0 0.0
    %736 = vmatprep.subr.mxu0 0.0
    %737 = vmatpush1.msra.mxu0 0.0
    %738 = vmatprep.subr.mxu0 0.0
    %739 = vmatpush1.msra.mxu0 0.0
    %740 = vmatprep.subr.mxu0 0.0
    %741 = vmatpush1.msra.mxu0 0.0
    %742 = vmatprep.subr.mxu0 0.0
    %743 = vmatpush1.msra.mxu0 0.0
    %744 = vmatprep.subr.mxu0 0.0
    %745 = vmatpush1.msra.mxu0 0.0
    %746 = vmatprep.subr.mxu0 0.0
    %747 = vmatpush1.msra.mxu0 0.0
    %748 = vmatprep.subr.mxu0 0.0
    %749 = vmatpush1.msra.mxu0 0.0
    %750 = vmatprep.subr.mxu0 0.0
    %751 = vmatpush1.msra.mxu0 0.0
    %752 = vmatprep.subr.mxu0 0.0
    %753 = vmatpush1.msra.mxu0 0.0
    %754 = vmatprep.subr.mxu0 0.0
    %755 = vmatpush1.msra.mxu0 0.0
    %756 = vmatprep.subr.mxu0 0.0
    %757 = vmatpush1.msra.mxu0 0.0
    %758 = vmatprep.subr.mxu0 0.0
    %759 = vmatpush1.msra.mxu0 0.0
    %760 = vmatprep.subr.mxu0 0.0
    %761 = vmatpush1.msra.mxu0 0.0
    %762 = vmatprep.subr.mxu0 0.0
    %763 = vmatpush1.msra.mxu0 0.0
    %764 = vmatprep.subr.mxu0 0.0
    %765 = vmatpush1.msra.mxu0 0.0
    %766 = vmatprep.subr.mxu0 0.0
    %767 = vmatpush1.msra.mxu0 0.0
    %768 = vmatprep.subr.mxu0 0.0
    %769 = vmatpush1.msra.mxu0 0.0
    %770 = vmatprep.subr.mxu0 0.0
    %771 = vmatpush1.msra.mxu0 0.0
    %772 = vmatprep.subr.mxu0 0.0
    %773 = vmatpush1.msra.mxu0 0.0
    %774 = vmatprep.subr.mxu0 0.0
    %775 = vmatpush1.msra.mxu0 0.0
    %776 = vmatprep.subr.mxu0 0.0
    %777 = vmatpush1.msra.mxu0 0.0
    %778 = vmatprep.mubr.f32.mxu0 0.0
    %779 = vmatmul.mubr.f32.gmra.mrb[0].mxu0 %v703
    %v780 = vpop.f32.mrb[0].mxu0
    %v781 = vadd.f32 %v701, %v780
    %v782 = vpop.f32.mrb[0].mxu0
    %783 = vmatprep.mubr.f32.mxu0 0.0
    %784 = vmatmul.mubr.f32.gmra.mrb[0].mxu0 %v706
    %v785 = vpop.f32.mrb[0].mxu0
    %v786 = vadd.f32 %v701, %v785
    %v787 = vpop.f32.mrb[0].mxu0
    %788 = vmatprep.mubr.f32.mxu0 0.0
    %789 = vmatmul.mubr.f32.gmra.mrb[0].mxu0 %v709
    %v790 = vpop.f32.mrb[0].mxu0
    %v791 = vadd.f32 %v701, %v790
    %v792 = vpop.f32.mrb[0].mxu0
    %793 = vmatprep.mubr.f32.mxu0 0.0
    %794 = vmatmul.mubr.f32.gmra.mrb[0].mxu0 %v712
    %v795 = vpop.f32.mrb[0].mxu0
    %v796 = vadd.f32 %v701, %v795
    %v797 = vpop.f32.mrb[0].mxu0
    %798 = vdwg.mxu0
    %799 = vmatprep.subr.mxu0 0.0
    %800 = vmatpush1.msra.mxu0 %v685
    %801 = vmatprep.subr.mxu0 0.0
    %802 = vmatpush1.msra.mxu0 %v686
    %803 = vmatprep.subr.mxu0 0.0
    %804 = vmatpush1.msra.mxu0 %v687
    %805 = vmatprep.subr.mxu0 0.0
    %806 = vmatpush1.msra.mxu0 %v688
    %807 = vmatprep.subr.mxu0 0.0
    %808 = vmatpush1.msra.mxu0 0.0
    %809 = vmatprep.subr.mxu0 0.0
    %810 = vmatpush1.msra.mxu0 0.0
    %811 = vmatprep.subr.mxu0 0.0
    %812 = vmatpush1.msra.mxu0 0.0
    %813 = vmatprep.subr.mxu0 0.0
    %814 = vmatpush1.msra.mxu0 0.0
    %815 = vmatprep.subr.mxu0 0.0
    %816 = vmatpush1.msra.mxu0 0.0
    %817 = vmatprep.subr.mxu0 0.0
    %818 = vmatpush1.msra.mxu0 0.0
    %819 = vmatprep.subr.mxu0 0.0
    %820 = vmatpush1.msra.mxu0 0.0
    %821 = vmatprep.subr.mxu0 0.0
    %822 = vmatpush1.msra.mxu0 0.0
    %823 = vmatprep.subr.mxu0 0.0
    %824 = vmatpush1.msra.mxu0 0.0
    %825 = vmatprep.subr.mxu0 0.0
    %826 = vmatpush1.msra.mxu0 0.0
    %827 = vmatprep.subr.mxu0 0.0
    %828 = vmatpush1.msra.mxu0 0.0
    %829 = vmatprep.subr.mxu0 0.0
    %830 = vmatpush1.msra.mxu0 0.0
    %831 = vmatprep.subr.mxu0 0.0
    %832 = vmatpush1.msra.mxu0 0.0
    %833 = vmatprep.subr.mxu0 0.0
    %834 = vmatpush1.msra.mxu0 0.0
    %835 = vmatprep.subr.mxu0 0.0
    %836 = vmatpush1.msra.mxu0 0.0
    %837 = vmatprep.subr.mxu0 0.0
    %838 = vmatpush1.msra.mxu0 0.0
    %839 = vmatprep.subr.mxu0 0.0
    %840 = vmatpush1.msra.mxu0 0.0
    %841 = vmatprep.subr.mxu0 0.0
    %842 = vmatpush1.msra.mxu0 0.0
    %843 = vmatprep.subr.mxu0 0.0
    %844 = vmatpush1.msra.mxu0 0.0
    %845 = vmatprep.subr.mxu0 0.0
    %846 = vmatpush1.msra.mxu0 0.0
    %847 = vmatprep.subr.mxu0 0.0
    %848 = vmatpush1.msra.mxu0 0.0
    %849 = vmatprep.subr.mxu0 0.0
    %850 = vmatpush1.msra.mxu0 0.0
    %851 = vmatprep.subr.mxu0 0.0
    %852 = vmatpush1.msra.mxu0 0.0
    %853 = vmatprep.subr.mxu0 0.0
    %854 = vmatpush1.msra.mxu0 0.0
    %855 = vmatprep.subr.mxu0 0.0
    %856 = vmatpush1.msra.mxu0 0.0
    %857 = vmatprep.subr.mxu0 0.0
    %858 = vmatpush1.msra.mxu0 0.0
    %859 = vmatprep.subr.mxu0 0.0
    %860 = vmatpush1.msra.mxu0 0.0
    %861 = vmatprep.subr.mxu0 0.0
    %862 = vmatpush1.msra.mxu0 0.0
    %863 = vmatprep.mubr.f32.mxu0 0.0
    %864 = vmatmul.mubr.f32.gmra.mrb[0].mxu0 %v289
    %v865 = vpop.f32.mrb[0].mxu0
    %v866 = vadd.f32 0.0, %v865
    %v867 = vpop.f32.mrb[0].mxu0
    %868 = vdwg.mxu0
    %v869 = vadd.f32 %v781, %v866
    %v870 = vmul.f32 %v869, %v47
    %v871 = vtanh.pop %v870
    %v872 = vmul.f32 %v47, %v871
    %v873 = vadd.f32 %v872, %v48
    %v874 = vmul.f32 %v873, 0.0
    %876 = vrot.lane.b32.xlu0 %v873, 64
    %v877 = vpop.permute.xlu0 %876
    %v879 = vmul.f32 %v873, %v877
    %881 = vrot.lane.b32.xlu0 %v879, 32
    %v882 = vpop.permute.xlu0 %881
    %v884 = vadd.f32 %v874, %v882
    %v885 = vtanh.pop %v884
    %887 = vrot.lane.b32.xlu0 %v885, 64
    %v888 = vpop.permute.xlu0 %887
    %v890 = vmul.f32 %v873, %v888
    %892 = vrot.lane.b32.xlu0 %v890, 32
    %v893 = vpop.permute.xlu0 %892
    %895 = vst.msk [vmem:[#allocation2] sm:$0xff] %vm287, %v893
    %v896 = vsel %vm287, %v893, 0
    %898 = vmatprep.subr.mxu0 0.0
    %899 = vmatpush1.msra.mxu0 %v685
    %900 = vmatprep.subr.mxu0 0.0
    %901 = vmatpush1.msra.mxu0 %v686
    %902 = vmatprep.subr.mxu0 0.0
    %903 = vmatpush1.msra.mxu0 %v687
    %904 = vmatprep.subr.mxu0 0.0
    %905 = vmatpush1.msra.mxu0 %v688
    %906 = vmatprep.subr.mxu0 0.0
    %907 = vmatpush1.msra.mxu0 0.0
    %908 = vmatprep.subr.mxu0 0.0
    %909 = vmatpush1.msra.mxu0 0.0
    %910 = vmatprep.subr.mxu0 0.0
    %911 = vmatpush1.msra.mxu0 0.0
    %912 = vmatprep.subr.mxu0 0.0
    %913 = vmatpush1.msra.mxu0 0.0
    %914 = vmatprep.subr.mxu0 0.0
    %915 = vmatpush1.msra.mxu0 0.0
    %916 = vmatprep.subr.mxu0 0.0
    %917 = vmatpush1.msra.mxu0 0.0
    %918 = vmatprep.subr.mxu0 0.0
    %919 = vmatpush1.msra.mxu0 0.0
    %920 = vmatprep.subr.mxu0 0.0
    %921 = vmatpush1.msra.mxu0 0.0
    %922 = vmatprep.subr.mxu0 0.0
    %923 = vmatpush1.msra.mxu0 0.0
    %924 = vmatprep.subr.mxu0 0.0
    %925 = vmatpush1.msra.mxu0 0.0
    %926 = vmatprep.subr.mxu0 0.0
    %927 = vmatpush1.msra.mxu0 0.0
    %928 = vmatprep.subr.mxu0 0.0
    %929 = vmatpush1.msra.mxu0 0.0
    %930 = vmatprep.subr.mxu0 0.0
    %931 = vmatpush1.msra.mxu0 0.0
    %932 = vmatprep.subr.mxu0 0.0
    %933 = vmatpush1.msra.mxu0 0.0
    %934 = vmatprep.subr.mxu0 0.0
    %935 = vmatpush1.msra.mxu0 0.0
    %936 = vmatprep.subr.mxu0 0.0
    %937 = vmatpush1.msra.mxu0 0.0
    %938 = vmatprep.subr.mxu0 0.0
    %939 = vmatpush1.msra.mxu0 0.0
    %940 = vmatprep.subr.mxu0 0.0
    %941 = vmatpush1.msra.mxu0 0.0
    %942 = vmatprep.subr.mxu0 0.0
    %943 = vmatpush1.msra.mxu0 0.0
    %944 = vmatprep.subr.mxu0 0.0
    %945 = vmatpush1.msra.mxu0 0.0
    %946 = vmatprep.subr.mxu0 0.0
    %947 = vmatpush1.msra.mxu0 0.0
    %948 = vmatprep.subr.mxu0 0.0
    %949 = vmatpush1.msra.mxu0 0.0
    %950 = vmatprep.subr.mxu0 0.0
    %951 = vmatpush1.msra.mxu0 0.0
    %952 = vmatprep.subr.mxu0 0.0
    %953 = vmatpush1.msra.mxu0 0.0
    %954 = vmatprep.subr.mxu0 0.0
    %955 = vmatpush1.msra.mxu0 0.0
    %956 = vmatprep.subr.mxu0 0.0
    %957 = vmatpush1.msra.mxu0 0.0
    %958 = vmatprep.subr.mxu0 0.0
    %959 = vmatpush1.msra.mxu0 0.0
    %960 = vmatprep.subr.mxu0 0.0
    %961 = vmatpush1.msra.mxu0 0.0
    %962 = vmatprep.mubr.f32.mxu0 0.0
    %963 = vmatmul.mubr.f32.gmra.mrb[0].mxu0 %v896
    %v964 = vpop.f32.mrb[0].mxu0
    %v965 = vadd.f32 0.0, %v964
    %v966 = vpop.f32.mrb[0].mxu0
    %967 = vdwg.mxu0
    %v968 = vadd.f32 %v786, %v965
    %v969 = vmul.f32 %v968, %v47
    %v970 = vtanh.pop %v969
    %v971 = vmul.f32 %v47, %v970
    %v972 = vadd.f32 %v971, %v48
    %v973 = vmul.f32 %v972, %v884
    %975 = vrot.lane.b32.xlu0 %v972, 64
    %v976 = vpop.permute.xlu0 %975
    %v978 = vmul.f32 %v972, %v976
    %980 = vrot.lane.b32.xlu0 %v978, 32
    %v981 = vpop.permute.xlu0 %980
    %v983 = vadd.f32 %v973, %v981
    %v984 = vtanh.pop %v983
    %986 = vrot.lane.b32.xlu0 %v984, 64
    %v987 = vpop.permute.xlu0 %986
    %v989 = vmul.f32 %v972, %v987
    %991 = vrot.lane.b32.xlu0 %v989, 32
    %v992 = vpop.permute.xlu0 %991
    %994 = vst.msk [vmem:[#allocation2 + $0x8] sm:$0xff] %vm287, %v992
    %v995 = vsel %vm287, %v992, 0
    %997 = vmatprep.subr.mxu0 0.0
    %998 = vmatpush1.msra.mxu0 %v685
    %999 = vmatprep.subr.mxu0 0.0
    %1000 = vmatpush1.msra.mxu0 %v686
    %1001 = vmatprep.subr.mxu0 0.0
    %1002 = vmatpush1.msra.mxu0 %v687
    %1003 = vmatprep.subr.mxu0 0.0
    %1004 = vmatpush1.msra.mxu0 %v688
    %1005 = vmatprep.subr.mxu0 0.0
    %1006 = vmatpush1.msra.mxu0 0.0
    %1007 = vmatprep.subr.mxu0 0.0
    %1008 = vmatpush1.msra.mxu0 0.0
    %1009 = vmatprep.subr.mxu0 0.0
    %1010 = vmatpush1.msra.mxu0 0.0
    %1011 = vmatprep.subr.mxu0 0.0
    %1012 = vmatpush1.msra.mxu0 0.0
    %1013 = vmatprep.subr.mxu0 0.0
    %1014 = vmatpush1.msra.mxu0 0.0
    %1015 = vmatprep.subr.mxu0 0.0
    %1016 = vmatpush1.msra.mxu0 0.0
    %1017 = vmatprep.subr.mxu0 0.0
    %1018 = vmatpush1.msra.mxu0 0.0
    %1019 = vmatprep.subr.mxu0 0.0
    %1020 = vmatpush1.msra.mxu0 0.0
    %1021 = vmatprep.subr.mxu0 0.0
    %1022 = vmatpush1.msra.mxu0 0.0
    %1023 = vmatprep.subr.mxu0 0.0
    %1024 = vmatpush1.msra.mxu0 0.0
    %1025 = vmatprep.subr.mxu0 0.0
    %1026 = vmatpush1.msra.mxu0 0.0
    %1027 = vmatprep.subr.mxu0 0.0
    %1028 = vmatpush1.msra.mxu0 0.0
    %1029 = vmatprep.subr.mxu0 0.0
    %1030 = vmatpush1.msra.mxu0 0.0
    %1031 = vmatprep.subr.mxu0 0.0
    %1032 = vmatpush1.msra.mxu0 0.0
    %1033 = vmatprep.subr.mxu0 0.0
    %1034 = vmatpush1.msra.mxu0 0.0
    %1035 = vmatprep.subr.mxu0 0.0
    %1036 = vmatpush1.msra.mxu0 0.0
    %1037 = vmatprep.subr.mxu0 0.0
    %1038 = vmatpush1.msra.mxu0 0.0
    %1039 = vmatprep.subr.mxu0 0.0
    %1040 = vmatpush1.msra.mxu0 0.0
    %1041 = vmatprep.subr.mxu0 0.0
    %1042 = vmatpush1.msra.mxu0 0.0
    %1043 = vmatprep.subr.mxu0 0.0
    %1044 = vmatpush1.msra.mxu0 0.0
    %1045 = vmatprep.subr.mxu0 0.0
    %1046 = vmatpush1.msra.mxu0 0.0
    %1047 = vmatprep.subr.mxu0 0.0
    %1048 = vmatpush1.msra.mxu0 0.0
    %1049 = vmatprep.subr.mxu0 0.0
    %1050 = vmatpush1.msra.mxu0 0.0
    %1051 = vmatprep.subr.mxu0 0.0
    %1052 = vmatpush1.msra.mxu0 0.0
    %1053 = vmatprep.subr.mxu0 0.0
    %1054 = vmatpush1.msra.mxu0 0.0
    %1055 = vmatprep.subr.mxu0 0.0
    %1056 = vmatpush1.msra.mxu0 0.0
    %1057 = vmatprep.subr.mxu0 0.0
    %1058 = vmatpush1.msra.mxu0 0.0
    %1059 = vmatprep.subr.mxu0 0.0
    %1060 = vmatpush1.msra.mxu0 0.0
    %1061 = vmatprep.mubr.f32.mxu0 0.0
    %1062 = vmatmul.mubr.f32.gmra.mrb[0].mxu0 %v995
    %v1063 = vpop.f32.mrb[0].mxu0
    %v1064 = vadd.f32 0.0, %v1063
    %v1065 = vpop.f32.mrb[0].mxu0
    %1066 = vdwg.mxu0
    %v1067 = vadd.f32 %v791, %v1064
    %v1068 = vmul.f32 %v1067, %v47
    %v1069 = vtanh.pop %v1068
    %v1070 = vmul.f32 %v47, %v1069
    %v1071 = vadd.f32 %v1070, %v48
    %v1072 = vmul.f32 %v1071, %v983
    %1074 = vrot.lane.b32.xlu0 %v1071, 64
    %v1075 = vpop.permute.xlu0 %1074
    %v1077 = vmul.f32 %v1071, %v1075
    %1079 = vrot.lane.b32.xlu0 %v1077, 32
    %v1080 = vpop.permute.xlu0 %1079
    %v1082 = vadd.f32 %v1072, %v1080
    %v1083 = vtanh.pop %v1082
    %1085 = vrot.lane.b32.xlu0 %v1083, 64
    %v1086 = vpop.permute.xlu0 %1085
    %v1088 = vmul.f32 %v1071, %v1086
    %1090 = vrot.lane.b32.xlu0 %v1088, 32
    %v1091 = vpop.permute.xlu0 %1090
    %1093 = vst.msk [vmem:[#allocation2 + $0x10] sm:$0xff] %vm287, %v1091
    %v1094 = vsel %vm287, %v1091, 0
    %1096 = vmatprep.subr.mxu0 0.0
    %1097 = vmatpush1.msra.mxu0 %v685
    %1098 = vmatprep.subr.mxu0 0.0
    %1099 = vmatpush1.msra.mxu0 %v686
    %1100 = vmatprep.subr.mxu0 0.0
    %1101 = vmatpush1.msra.mxu0 %v687
    %1102 = vmatprep.subr.mxu0 0.0
    %1103 = vmatpush1.msra.mxu0 %v688
    %1104 = vmatprep.subr.mxu0 0.0
    %1105 = vmatpush1.msra.mxu0 0.0
    %1106 = vmatprep.subr.mxu0 0.0
    %1107 = vmatpush1.msra.mxu0 0.0
    %1108 = vmatprep.subr.mxu0 0.0
    %1109 = vmatpush1.msra.mxu0 0.0
    %1110 = vmatprep.subr.mxu0 0.0
    %1111 = vmatpush1.msra.mxu0 0.0
    %1112 = vmatprep.subr.mxu0 0.0
    %1113 = vmatpush1.msra.mxu0 0.0
    %1114 = vmatprep.subr.mxu0 0.0
    %1115 = vmatpush1.msra.mxu0 0.0
    %1116 = vmatprep.subr.mxu0 0.0
    %1117 = vmatpush1.msra.mxu0 0.0
    %1118 = vmatprep.subr.mxu0 0.0
    %1119 = vmatpush1.msra.mxu0 0.0
    %1120 = vmatprep.subr.mxu0 0.0
    %1121 = vmatpush1.msra.mxu0 0.0
    %1122 = vmatprep.subr.mxu0 0.0
    %1123 = vmatpush1.msra.mxu0 0.0
    %1124 = vmatprep.subr.mxu0 0.0
    %1125 = vmatpush1.msra.mxu0 0.0
    %1126 = vmatprep.subr.mxu0 0.0
    %1127 = vmatpush1.msra.mxu0 0.0
    %1128 = vmatprep.subr.mxu0 0.0
    %1129 = vmatpush1.msra.mxu0 0.0
    %1130 = vmatprep.subr.mxu0 0.0
    %1131 = vmatpush1.msra.mxu0 0.0
    %1132 = vmatprep.subr.mxu0 0.0
    %1133 = vmatpush1.msra.mxu0 0.0
    %1134 = vmatprep.subr.mxu0 0.0
    %1135 = vmatpush1.msra.mxu0 0.0
    %1136 = vmatprep.subr.mxu0 0.0
    %1137 = vmatpush1.msra.mxu0 0.0
    %1138 = vmatprep.subr.mxu0 0.0
    %1139 = vmatpush1.msra.mxu0 0.0
    %1140 = vmatprep.subr.mxu0 0.0
    %1141 = vmatpush1.msra.mxu0 0.0
    %1142 = vmatprep.subr.mxu0 0.0
    %1143 = vmatpush1.msra.mxu0 0.0
    %1144 = vmatprep.subr.mxu0 0.0
    %1145 = vmatpush1.msra.mxu0 0.0
    %1146 = vmatprep.subr.mxu0 0.0
    %1147 = vmatpush1.msra.mxu0 0.0
    %1148 = vmatprep.subr.mxu0 0.0
    %1149 = vmatpush1.msra.mxu0 0.0
    %1150 = vmatprep.subr.mxu0 0.0
    %1151 = vmatpush1.msra.mxu0 0.0
    %1152 = vmatprep.subr.mxu0 0.0
    %1153 = vmatpush1.msra.mxu0 0.0
    %1154 = vmatprep.subr.mxu0 0.0
    %1155 = vmatpush1.msra.mxu0 0.0
    %1156 = vmatprep.subr.mxu0 0.0
    %1157 = vmatpush1.msra.mxu0 0.0
    %1158 = vmatprep.subr.mxu0 0.0
    %1159 = vmatpush1.msra.mxu0 0.0
    %1160 = vmatprep.mubr.f32.mxu0 0.0
    %1161 = vmatmul.mubr.f32.gmra.mrb[0].mxu0 %v1094
    %v1162 = vpop.f32.mrb[0].mxu0
    %v1163 = vadd.f32 0.0, %v1162
    %v1164 = vpop.f32.mrb[0].mxu0
    %1165 = vdwg.mxu0
    %v1166 = vadd.f32 %v796, %v1163
    %v1167 = vmul.f32 %v1166, %v47
    %v1168 = vtanh.pop %v1167
    %v1169 = vmul.f32 %v47, %v1168
    %v1170 = vadd.f32 %v1169, %v48
    %v1171 = vmul.f32 %v1170, %v1082
    %1173 = vrot.lane.b32.xlu0 %v1170, 64
    %v1174 = vpop.permute.xlu0 %1173
    %v1176 = vmul.f32 %v1170, %v1174
    %1178 = vrot.lane.b32.xlu0 %v1176, 32
    %v1179 = vpop.permute.xlu0 %1178
    %v1181 = vadd.f32 %v1171, %v1179
    %v1182 = vtanh.pop %v1181
    %1184 = vrot.lane.b32.xlu0 %v1182, 64
    %v1185 = vpop.permute.xlu0 %1184
    %v1187 = vmul.f32 %v1170, %v1185
    %1189 = vrot.lane.b32.xlu0 %v1187, 32
    %v1190 = vpop.permute.xlu0 %1189
    %1192 = vst.msk [vmem:[#allocation2 + $0x18] sm:$0xff] %vm287, %v1190
    %v1193 = vld [vmem:[#allocation5 + $0x88] sm:$0xff]
    %v1194 = vld [vmem:[#allocation5 + $0x90] sm:$0xff]
    %v1195 = vld [vmem:[#allocation5 + $0x98] sm:$0xff]
    %v1196 = vld [vmem:[#allocation5 + $0xa0] sm:$0xff]
    %v1197 = vld [vmem:[#allocation5 + $0xa8] sm:$0x1]
    %v1198 = vld [vmem:[#allocation2] sm:$0xff]
    %v1199 = vld [vmem:[#allocation2 + $0x8] sm:$0xff]
    %v1200 = vld [vmem:[#allocation2 + $0x10] sm:$0xff]
    %v1201 = vld [vmem:[#allocation2 + $0x18] sm:$0xff]
    %v1202 = vlaneseq
    %v1203 = vshrl.u32 %v1202, 7
    %v1204 = vsub.s32 0, %v1203
    %v1205 = vrot.slane %v1197, %v1204
    %v1207 = vsel %vm287, %v1198, 0
    %v1210 = vsel %vm287, %v1199, 0
    %v1213 = vsel %vm287, %v1200, 0
    %v1216 = vsel %vm287, %v1201, 0
    %1218 = vmatprep.subr.mxu0 0.0
    %1219 = vmatpush1.msra.mxu0 %v1193
    %1220 = vmatprep.subr.mxu0 0.0
    %1221 = vmatpush1.msra.mxu0 %v1194
    %1222 = vmatprep.subr.mxu0 0.0
    %1223 = vmatpush1.msra.mxu0 %v1195
    %1224 = vmatprep.subr.mxu0 0.0
    %1225 = vmatpush1.msra.mxu0 %v1196
    %1226 = vmatprep.subr.mxu0 0.0
    %1227 = vmatpush1.msra.mxu0 0.0
    %1228 = vmatprep.subr.mxu0 0.0
    %1229 = vmatpush1.msra.mxu0 0.0
    %1230 = vmatprep.subr.mxu0 0.0
    %1231 = vmatpush1.msra.mxu0 0.0
    %1232 = vmatprep.subr.mxu0 0.0
    %1233 = vmatpush1.msra.mxu0 0.0
    %1234 = vmatprep.subr.mxu0 0.0
    %1235 = vmatpush1.msra.mxu0 0.0
    %1236 = vmatprep.subr.mxu0 0.0
    %1237 = vmatpush1.msra.mxu0 0.0
    %1238 = vmatprep.subr.mxu0 0.0
    %1239 = vmatpush1.msra.mxu0 0.0
    %1240 = vmatprep.subr.mxu0 0.0
    %1241 = vmatpush1.msra.mxu0 0.0
    %1242 = vmatprep.subr.mxu0 0.0
    %1243 = vmatpush1.msra.mxu0 0.0
    %1244 = vmatprep.subr.mxu0 0.0
    %1245 = vmatpush1.msra.mxu0 0.0
    %1246 = vmatprep.subr.mxu0 0.0
    %1247 = vmatpush1.msra.mxu0 0.0
    %1248 = vmatprep.subr.mxu0 0.0
    %1249 = vmatpush1.msra.mxu0 0.0
    %1250 = vmatprep.subr.mxu0 0.0
    %1251 = vmatpush1.msra.mxu0 0.0
    %1252 = vmatprep.subr.mxu0 0.0
    %1253 = vmatpush1.msra.mxu0 0.0
    %1254 = vmatprep.subr.mxu0 0.0
    %1255 = vmatpush1.msra.mxu0 0.0
    %1256 = vmatprep.subr.mxu0 0.0
    %1257 = vmatpush1.msra.mxu0 0.0
    %1258 = vmatprep.subr.mxu0 0.0
    %1259 = vmatpush1.msra.mxu0 0.0
    %1260 = vmatprep.subr.mxu0 0.0
    %1261 = vmatpush1.msra.mxu0 0.0
    %1262 = vmatprep.subr.mxu0 0.0
    %1263 = vmatpush1.msra.mxu0 0.0
    %1264 = vmatprep.subr.mxu0 0.0
    %1265 = vmatpush1.msra.mxu0 0.0
    %1266 = vmatprep.subr.mxu0 0.0
    %1267 = vmatpush1.msra.mxu0 0.0
    %1268 = vmatprep.subr.mxu0 0.0
    %1269 = vmatpush1.msra.mxu0 0.0
    %1270 = vmatprep.subr.mxu0 0.0
    %1271 = vmatpush1.msra.mxu0 0.0
    %1272 = vmatprep.subr.mxu0 0.0
    %1273 = vmatpush1.msra.mxu0 0.0
    %1274 = vmatprep.subr.mxu0 0.0
    %1275 = vmatpush1.msra.mxu0 0.0
    %1276 = vmatprep.subr.mxu0 0.0
    %1277 = vmatpush1.msra.mxu0 0.0
    %1278 = vmatprep.subr.mxu0 0.0
    %1279 = vmatpush1.msra.mxu0 0.0
    %1280 = vmatprep.subr.mxu0 0.0
    %1281 = vmatpush1.msra.mxu0 0.0
    %1282 = vmatprep.mubr.f32.mxu0 0.0
    %1283 = vmatmul.mubr.f32.gmra.mrb[0].mxu0 %v1207
    %v1284 = vpop.f32.mrb[0].mxu0
    %v1285 = vadd.f32 %v1205, %v1284
    %v1286 = vpop.f32.mrb[0].mxu0
    %1287 = vmatprep.mubr.f32.mxu0 0.0
    %1288 = vmatmul.mubr.f32.gmra.mrb[0].mxu0 %v1210
    %v1289 = vpop.f32.mrb[0].mxu0
    %v1290 = vadd.f32 %v1205, %v1289
    %v1291 = vpop.f32.mrb[0].mxu0
    %1292 = vmatprep.mubr.f32.mxu0 0.0
    %1293 = vmatmul.mubr.f32.gmra.mrb[0].mxu0 %v1213
    %v1294 = vpop.f32.mrb[0].mxu0
    %v1295 = vadd.f32 %v1205, %v1294
    %v1296 = vpop.f32.mrb[0].mxu0
    %1297 = vmatprep.mubr.f32.mxu0 0.0
    %1298 = vmatmul.mubr.f32.gmra.mrb[0].mxu0 %v1216
    %v1299 = vpop.f32.mrb[0].mxu0
    %v1300 = vadd.f32 %v1205, %v1299
    %v1301 = vpop.f32.mrb[0].mxu0
    %1302 = vdwg.mxu0
    %1303 = vst [vmem:[%s3] sm:$0xff] %v1285
    %1304 = vst [vmem:[%s3 + $0x8] sm:$0xff] %v1290
    %1305 = vst [vmem:[%s3 + $0x10] sm:$0xff] %v1295
    %1306 = vst [vmem:[%s3 + $0x18] sm:$0xff] %v1300
    // Predicated region
    $region22: #{seq2seq_forward.1} parent=1 // pred_check
      _
    $region23: #{seq2seq_forward.1} parent=1 // pred_check_branch
      %1308 = sbr.rel (0) target = $region25
    $region24: #{seq2seq_forward.1} parent=1 // pred_region
      _
    $region25: #{seq2seq_forward.1} parent=1 // pred_fallthru
      _
    // Predicated region
    $region26: #{seq2seq_forward.1} parent=1 // pred_check
      _
    $region27: #{seq2seq_forward.1} parent=1 // pred_check_branch
      %1310 = sbr.rel (0) target = $region29
    $region28: #{seq2seq_forward.1} parent=1 // pred_region
      _
    $region29: #{seq2seq_forward.1} parent=1 // pred_fallthru
      _
    %1311 = vsyncpa [#allocation4], 1
    %1312 = vsyncpa [#allocation6], 1

</llo_original>
